<compile_context>
chip_gen: v7x
topology: tpu7x:2x2x1
jax: 0.10.0
libtpu: 0.0.40
codegen_flags: <defaults>
</compile_context>

<pallas_src>
import functools

import jax
import jax.numpy as jnp
from jax.experimental import pallas as pl
from jax.experimental.pallas import tpu as pltpu


def _skipgram_kernel(pos_u_ref, pos_v_ref, neg_v_ref,     # scalar prefetch (SMEM)
                     u_tab_ref, v_tab_ref,                 # VMEM-resident tables
                     o_ref,                                # (1, 1, 1) partial loss
                     eu_buf, vv_buf,                        # VMEM scratch
                     *, bt, k, b_actual, tiles_per_core):
    core = pl.program_id(0)
    t = pl.program_id(1)
    tile = core * tiles_per_core + t
    base = tile * bt

    @pl.when(t == 0)
    def _():
        o_ref[...] = jnp.zeros_like(o_ref)

    # ---- fused gather: dynamic row reads from the VMEM-resident tables ------
    # Indices live in SMEM (scalar prefetch).  Rows are cast to f32 here so the
    # score math is f32 regardless of the table dtype (v5e has no bf16 VPU/EUP).
    def gather_row(i, carry):
        row = base + i
        u_idx = pos_u_ref[row]
        pv_idx = pos_v_ref[row]
        eu_buf[pl.ds(i, 1), :] = u_tab_ref[pl.ds(u_idx, 1), :].astype(jnp.float32)
        # Slot 0 holds the NEGATED positive-context row, folding the positive
        # loss term into the negative-sample path (clip is symmetric, exact).
        vv_buf[0, pl.ds(i, 1), :] = -v_tab_ref[pl.ds(pv_idx, 1), :].astype(jnp.float32)
        for j in range(k):
            nv_idx = neg_v_ref[row * k + j]
            vv_buf[j + 1, pl.ds(i, 1), :] = (
                v_tab_ref[pl.ds(nv_idx, 1), :].astype(jnp.float32))
        return carry

    jax.lax.fori_loop(0, bt, gather_row, 0, unroll=min(bt, 8))

    # ---- loss math: single fused pass over (K+1, bt, D) ---------------------
    eu = eu_buf[...]                                   # (bt, D)
    av = vv_buf[...]                                   # (K+1, bt, D)
    s = jnp.sum(av * eu[None, :, :], axis=-1)          # (K+1, bt)  VPU mul + XLU reduce
    s = jnp.clip(s, -10.0, 10.0)
    per_elem = jnp.log1p(jnp.exp(s))                   # == -logsigmoid terms (EUP)

    # Mask rows that are only batch padding.
    row_ids = base + jax.lax.broadcasted_iota(jnp.int32, per_elem.shape, 1)
    per_elem = jnp.where(row_ids < b_actual, per_elem, 0.0)

    tile_sum = jnp.sum(per_elem, axis=1, keepdims=True)       # (K+1, 1)
    tile_sum = jnp.sum(tile_sum, axis=0, keepdims=True)       # (1, 1)
    o_ref[...] += tile_sum.reshape(1, 1, 1)

    @pl.when(t == tiles_per_core - 1)
    def _():
        o_ref[...] = o_ref[...] * (1.0 / float(b_actual))


def _round_up(x, m):
    return (x + m - 1) // m * m


def skipgram_forward(u_weight, v_weight, pos_u, pos_v, neg_v, *,
                     block_b=256, num_cores=1):
    """SkipGram forward: embedding gather + NEG loss fully inside one Pallas kernel."""
    B = int(pos_u.shape[0])
    K = int(neg_v.shape[1])
    V = int(u_weight.shape[0])
    D = int(u_weight.shape[1])
    assert v_weight.shape == u_weight.shape

    # VMEM-resident-table budget guard: count the (8,128)-padded footprint and
    # assume the pipeline double-buffers each input block.  Bigger vocabularies
    # need the HBM + double-buffered-DMA fallback (see TODO at top of file).
    tab_bytes = sum(
        _round_up(int(w.shape[0]), 8) * _round_up(int(w.shape[1]), 128)
        * w.dtype.itemsize for w in (u_weight, v_weight))
    if 2 * tab_bytes > 12 * 1024 * 1024:
        raise NotImplementedError(
            "embedding tables too large for the VMEM-resident gather path; "
            "use the HBM-table + per-row-DMA fallback (TODO).")

    # Batch tile: big enough to amortize per-grid-step overhead, never larger
    # than the (8-row aligned) batch itself.  Per-tile VMEM scratch is
    # ~ (K+2) * bt * max(D,128) * 4 bytes -- tiny even at bt=512, well inside
    # v7x's 64 MiB physical / 32 MiB default scoped VMEM.
    bt = max(1, min(int(block_b), _round_up(B, 8)))
    num_cores = max(1, int(num_cores))
    tiles_per_core = pl.cdiv(pl.cdiv(B, bt), num_cores)
    b_pad = num_cores * tiles_per_core * bt

    # Pad index arrays to a whole number of tiles (padded rows gather row 0 and
    # are masked out of the loss in-kernel).  neg_v is flattened so the SMEM
    # prefetch buffer stays 1-D (avoids 2-D SMEM lane padding).
    pos_u_p = jnp.zeros((b_pad,), jnp.int32).at[:B].set(pos_u.astype(jnp.int32))
    pos_v_p = jnp.zeros((b_pad,), jnp.int32).at[:B].set(pos_v.astype(jnp.int32))
    neg_v_p = jnp.zeros((b_pad * K,), jnp.int32).at[:B * K].set(
        neg_v.reshape(-1).astype(jnp.int32))

    kernel = functools.partial(_skipgram_kernel, bt=bt, k=K, b_actual=B,
                               tiles_per_core=tiles_per_core)

    out = pl.pallas_call(
        kernel,
        out_shape=jax.ShapeDtypeStruct((num_cores, 1, 1), jnp.float32),
        grid_spec=pltpu.PrefetchScalarGridSpec(
            num_scalar_prefetch=3,                        # pos_u, pos_v, neg_v -> SMEM
            grid=(num_cores, tiles_per_core),
            in_specs=[
                # Full-extent, constant-index blocks: tables are DMA'd to VMEM
                # once (native dtype) and stay resident across all grid steps.
                pl.BlockSpec((V, D), lambda c, t, *_: (0, 0)),
                pl.BlockSpec((V, D), lambda c, t, *_: (0, 0)),
            ],
            out_specs=pl.BlockSpec((1, 1, 1), lambda c, t, *_: (c, 0, 0)),
            scratch_shapes=[
                pltpu.VMEM((bt, D), jnp.float32),          # gathered u rows
                pltpu.VMEM((K + 1, bt, D), jnp.float32),   # [-pos_v | neg_v] rows
            ]),
        compiler_params=pltpu.CompilerParams(
            dimension_semantics=("parallel", "arbitrary")),
    )(pos_u_p, pos_v_p, neg_v_p, u_weight, v_weight)
    return jnp.sum(out)


def _reference_forward(u_weight, v_weight, pos_u, pos_v, neg_v):
    """Pure-JAX mirror of the PyTorch forward (for correctness checking)."""
    emb_u = jnp.take(u_weight, pos_u, axis=0)
    emb_v = jnp.take(v_weight, pos_v, axis=0)
    emb_neg_v = jnp.take(v_weight, neg_v, axis=0)
    score = jnp.sum(emb_u * emb_v, axis=1)
    score = jnp.clip(score, -10.0, 10.0)
    score = -jax.nn.log_sigmoid(score)
    neg_score = jnp.einsum("bkd,bd->bk", emb_neg_v, emb_u)
    neg_score = jnp.clip(neg_score, -10.0, 10.0)
    neg_score = -jnp.sum(jax.nn.log_sigmoid(-neg_score), axis=1)
    return jnp.mean(score + neg_score)


if __name__ == "__main__":
    emb_size = 100        # vocabulary size
    emb_dimension = 32    # embedding dim D
    B = 8                 # batch
    K = 5                 # negative samples per positive

    key = jax.random.PRNGKey(0)
    k_u, k_v, k_pu, k_pv, k_nv, k_pu3, k_pv3, k_nv3 = jax.random.split(key, 8)

    # Deterministic init mirroring the PyTorch __init__:
    #   u_embeddings ~ U(-1/D, 1/D), v_embeddings = 0
    initrange = 1.0 / emb_dimension
    u_weight = jax.random.uniform(
        k_u, (emb_size, emb_dimension), jnp.float32, -initrange, initrange)
    v_weight0 = jnp.zeros((emb_size, emb_dimension), jnp.float32)

    pos_u = jax.random.randint(k_pu, (B,), 0, emb_size, jnp.int32)
    pos_v = jax.random.randint(k_pv, (B,), 0, emb_size, jnp.int32)
    neg_v = jax.random.randint(k_nv, (B, K), 0, emb_size, jnp.int32)

    # Case 1: the module's own init (v_embeddings all zero), single tile.
    loss = jax.block_until_ready(
        skipgram_forward(u_weight, v_weight0, pos_u, pos_v, neg_v, block_b=8))
    ref = jax.block_until_ready(
        _reference_forward(u_weight, v_weight0, pos_u, pos_v, neg_v))
    assert jnp.allclose(loss, ref, rtol=1e-5, atol=1e-5), (loss, ref)

    # Case 2: non-zero v weights + ragged batch (B=6 with block_b=4) to exercise
    # the fused gather, multi-tile accumulation into the resident output block,
    # and the padding mask.
    v_weight1 = 10.0 * jax.random.uniform(
        k_v, (emb_size, emb_dimension), jnp.float32, -initrange, initrange)
    B2 = 6
    loss2 = jax.block_until_ready(
        skipgram_forward(10.0 * u_weight, v_weight1,
                         pos_u[:B2], pos_v[:B2], neg_v[:B2], block_b=4))
    ref2 = jax.block_until_ready(
        _reference_forward(10.0 * u_weight, v_weight1,
                           pos_u[:B2], pos_v[:B2], neg_v[:B2]))
    assert jnp.allclose(loss2, ref2, rtol=1e-5, atol=1e-5), (loss2, ref2)

    # Case 3: larger batch + 2-way core split (leading "parallel" grid axis, one
    # partial-loss block per core, summed in the wrapper) — the v7x megacore
    # path; correct (just serial) on single-TensorCore chips.
    B3 = 64
    pos_u3 = jax.random.randint(k_pu3, (B3,), 0, emb_size, jnp.int32)
    pos_v3 = jax.random.randint(k_pv3, (B3,), 0, emb_size, jnp.int32)
    neg_v3 = jax.random.randint(k_nv3, (B3, K), 0, emb_size, jnp.int32)
    loss3 = jax.block_until_ready(
        skipgram_forward(u_weight, v_weight1, pos_u3, pos_v3, neg_v3,
                         block_b=16, num_cores=2))
    ref3 = jax.block_until_ready(
        _reference_forward(u_weight, v_weight1, pos_u3, pos_v3, neg_v3))
    assert jnp.allclose(loss3, ref3, rtol=1e-5, atol=1e-5), (loss3, ref3)

    print("KERNEL_OK")
</pallas_src>

<mosaic_0001>
module attributes {stable_mosaic.version = 11 : i64} {
  func.func @_skipgram_kernel(%arg0: i32, %arg1: i32, %arg2: memref<8xi32, #tpu.memory_space<smem>>, %arg3: memref<8xi32, #tpu.memory_space<smem>>, %arg4: memref<40xi32, #tpu.memory_space<smem>>, %arg5: memref<100x32xf32, #tpu.memory_space<vmem>>, %arg6: memref<100x32xf32, #tpu.memory_space<vmem>>, %arg7: memref<1x1x1xf32, #tpu.memory_space<vmem>>, %arg8: memref<8x32xf32, #tpu.memory_space<vmem>>, %arg9: memref<6x8x32xf32, #tpu.memory_space<vmem>>) attributes {dimension_semantics = [#tpu.dimension_semantics<parallel>, #tpu.dimension_semantics<arbitrary>], iteration_bounds = array<i64: 1, 1>, scalar_prefetch = 3 : i64, scratch_operands = 2 : i64, tpu.core_type = #tpu.core_type<tc>, window_params = [{pipeline_mode = #tpu.pipeline_mode<synchronous>, transform_indices = @transform_0, window_bounds = array<i64: 100, 32>}, {pipeline_mode = #tpu.pipeline_mode<synchronous>, transform_indices = @transform_1, window_bounds = array<i64: 100, 32>}, {transform_indices = @transform_2, window_bounds = array<i64: 1, 1, 1>}]} {
    %c1_i32 = arith.constant 1 : i32
    %0 = arith.muli %arg0, %c1_i32 : i32
    %1 = arith.addi %0, %arg1 : i32
    %c8_i32 = arith.constant 8 : i32
    %2 = arith.muli %1, %c8_i32 : i32
    %c0_i32 = arith.constant 0 : i32
    %3 = arith.cmpi eq, %arg1, %c0_i32 : i32
    %4 = arith.extui %3 : i1 to i32
    %c0_i32_0 = arith.constant 0 : i32
    %5 = arith.cmpi ne, %4, %c0_i32_0 : i32
    scf.if %5 {
      %cst_265 = arith.constant 0.000000e+00 : f32
      %572 = vector.broadcast %cst_265 : f32 to vector<1x1x1xf32>
      %c0_266 = arith.constant 0 : index
      %c0_267 = arith.constant 0 : index
      %c0_268 = arith.constant 0 : index
      %573 = vector.load %arg7[%c0_266, %c0_267, %c0_268] : memref<1x1x1xf32, #tpu.memory_space<vmem>>, vector<1x1x1xf32>
      tpu.vector_store %arg7[%c0_266, %c0_267, %c0_268], %572 {strides = array<i32>} : memref<1x1x1xf32, #tpu.memory_space<vmem>>, vector<1x1x1xf32>,
    } else {
    }
    %c0_i32_1 = arith.constant 0 : i32
    %6 = arith.addi %2, %c0_i32_1 : i32
    %7 = arith.index_cast %6 : i32 to index
    %8 = memref.load %arg2[%7] : memref<8xi32, #tpu.memory_space<smem>>
    %9 = arith.index_cast %6 : i32 to index
    %10 = memref.load %arg3[%9] : memref<8xi32, #tpu.memory_space<smem>>
    %11 = arith.index_cast %8 : i32 to index
    %c0 = arith.constant 0 : index
    %12 = vector.load %arg5[%11, %c0] : memref<100x32xf32, #tpu.memory_space<vmem>>, vector<1x32xf32>
    %13 = arith.index_cast %c0_i32_1 : i32 to index
    %c0_2 = arith.constant 0 : index
    %14 = vector.load %arg8[%13, %c0_2] : memref<8x32xf32, #tpu.memory_space<vmem>>, vector<1x32xf32>
    tpu.vector_store %arg8[%13, %c0_2], %12 {strides = array<i32>} : memref<8x32xf32, #tpu.memory_space<vmem>>, vector<1x32xf32>,
    %15 = arith.index_cast %10 : i32 to index
    %c0_3 = arith.constant 0 : index
    %16 = vector.load %arg6[%15, %c0_3] : memref<100x32xf32, #tpu.memory_space<vmem>>, vector<1x32xf32>
    %cst = arith.constant 0.000000e+00 : f32
    %17 = vector.broadcast %cst : f32 to vector<1x32xf32>
    %18 = arith.subf %17, %16 : vector<1x32xf32>
    %c0_4 = arith.constant 0 : index
    %19 = arith.index_cast %c0_i32_1 : i32 to index
    %c0_5 = arith.constant 0 : index
    %20 = vector.load %arg9[%c0_4, %19, %c0_5] : memref<6x8x32xf32, #tpu.memory_space<vmem>>, vector<1x1x32xf32>
    %21 = vector.shape_cast %20 : vector<1x1x32xf32> to vector<1x32xf32>
    %22 = vector.shape_cast %18 : vector<1x32xf32> to vector<1x1x32xf32>
    tpu.vector_store %arg9[%c0_4, %19, %c0_5], %22 {strides = array<i32>} : memref<6x8x32xf32, #tpu.memory_space<vmem>>, vector<1x1x32xf32>,
    %c5_i32 = arith.constant 5 : i32
    %23 = arith.muli %6, %c5_i32 : i32
    %c0_i32_6 = arith.constant 0 : i32
    %24 = arith.addi %23, %c0_i32_6 : i32
    %25 = arith.index_cast %24 : i32 to index
    %26 = memref.load %arg4[%25] : memref<40xi32, #tpu.memory_space<smem>>
    %27 = arith.index_cast %26 : i32 to index
    %c0_7 = arith.constant 0 : index
    %28 = vector.load %arg6[%27, %c0_7] : memref<100x32xf32, #tpu.memory_space<vmem>>, vector<1x32xf32>
    %c1 = arith.constant 1 : index
    %29 = arith.index_cast %c0_i32_1 : i32 to index
    %c0_8 = arith.constant 0 : index
    %30 = vector.load %arg9[%c1, %29, %c0_8] : memref<6x8x32xf32, #tpu.memory_space<vmem>>, vector<1x1x32xf32>
    %31 = vector.shape_cast %30 : vector<1x1x32xf32> to vector<1x32xf32>
    %32 = vector.shape_cast %28 : vector<1x32xf32> to vector<1x1x32xf32>
    tpu.vector_store %arg9[%c1, %29, %c0_8], %32 {strides = array<i32>} : memref<6x8x32xf32, #tpu.memory_space<vmem>>, vector<1x1x32xf32>,
    %c5_i32_9 = arith.constant 5 : i32
    %33 = arith.muli %6, %c5_i32_9 : i32
    %c1_i32_10 = arith.constant 1 : i32
    %34 = arith.addi %33, %c1_i32_10 : i32
    %35 = arith.index_cast %34 : i32 to index
    %36 = memref.load %arg4[%35] : memref<40xi32, #tpu.memory_space<smem>>
    %37 = arith.index_cast %36 : i32 to index
    %c0_11 = arith.constant 0 : index
    %38 = vector.load %arg6[%37, %c0_11] : memref<100x32xf32, #tpu.memory_space<vmem>>, vector<1x32xf32>
    %c2 = arith.constant 2 : index
    %39 = arith.index_cast %c0_i32_1 : i32 to index
    %c0_12 = arith.constant 0 : index
    %40 = vector.load %arg9[%c2, %39, %c0_12] : memref<6x8x32xf32, #tpu.memory_space<vmem>>, vector<1x1x32xf32>
    %41 = vector.shape_cast %40 : vector<1x1x32xf32> to vector<1x32xf32>
    %42 = vector.shape_cast %38 : vector<1x32xf32> to vector<1x1x32xf32>
    tpu.vector_store %arg9[%c2, %39, %c0_12], %42 {strides = array<i32>} : memref<6x8x32xf32, #tpu.memory_space<vmem>>, vector<1x1x32xf32>,
    %c5_i32_13 = arith.constant 5 : i32
    %43 = arith.muli %6, %c5_i32_13 : i32
    %c2_i32 = arith.constant 2 : i32
    %44 = arith.addi %43, %c2_i32 : i32
    %45 = arith.index_cast %44 : i32 to index
    %46 = memref.load %arg4[%45] : memref<40xi32, #tpu.memory_space<smem>>
    %47 = arith.index_cast %46 : i32 to index
    %c0_14 = arith.constant 0 : index
    %48 = vector.load %arg6[%47, %c0_14] : memref<100x32xf32, #tpu.memory_space<vmem>>, vector<1x32xf32>
    %c3 = arith.constant 3 : index
    %49 = arith.index_cast %c0_i32_1 : i32 to index
    %c0_15 = arith.constant 0 : index
    %50 = vector.load %arg9[%c3, %49, %c0_15] : memref<6x8x32xf32, #tpu.memory_space<vmem>>, vector<1x1x32xf32>
    %51 = vector.shape_cast %50 : vector<1x1x32xf32> to vector<1x32xf32>
    %52 = vector.shape_cast %48 : vector<1x32xf32> to vector<1x1x32xf32>
    tpu.vector_store %arg9[%c3, %49, %c0_15], %52 {strides = array<i32>} : memref<6x8x32xf32, #tpu.memory_space<vmem>>, vector<1x1x32xf32>,
    %c5_i32_16 = arith.constant 5 : i32
    %53 = arith.muli %6, %c5_i32_16 : i32
    %c3_i32 = arith.constant 3 : i32
    %54 = arith.addi %53, %c3_i32 : i32
    %55 = arith.index_cast %54 : i32 to index
    %56 = memref.load %arg4[%55] : memref<40xi32, #tpu.memory_space<smem>>
    %57 = arith.index_cast %56 : i32 to index
    %c0_17 = arith.constant 0 : index
    %58 = vector.load %arg6[%57, %c0_17] : memref<100x32xf32, #tpu.memory_space<vmem>>, vector<1x32xf32>
    %c4 = arith.constant 4 : index
    %59 = arith.index_cast %c0_i32_1 : i32 to index
    %c0_18 = arith.constant 0 : index
    %60 = vector.load %arg9[%c4, %59, %c0_18] : memref<6x8x32xf32, #tpu.memory_space<vmem>>, vector<1x1x32xf32>
    %61 = vector.shape_cast %60 : vector<1x1x32xf32> to vector<1x32xf32>
    %62 = vector.shape_cast %58 : vector<1x32xf32> to vector<1x1x32xf32>
    tpu.vector_store %arg9[%c4, %59, %c0_18], %62 {strides = array<i32>} : memref<6x8x32xf32, #tpu.memory_space<vmem>>, vector<1x1x32xf32>,
    %c5_i32_19 = arith.constant 5 : i32
    %63 = arith.muli %6, %c5_i32_19 : i32
    %c4_i32 = arith.constant 4 : i32
    %64 = arith.addi %63, %c4_i32 : i32
    %65 = arith.index_cast %64 : i32 to index
    %66 = memref.load %arg4[%65] : memref<40xi32, #tpu.memory_space<smem>>
    %67 = arith.index_cast %66 : i32 to index
    %c0_20 = arith.constant 0 : index
    %68 = vector.load %arg6[%67, %c0_20] : memref<100x32xf32, #tpu.memory_space<vmem>>, vector<1x32xf32>
    %c5 = arith.constant 5 : index
    %69 = arith.index_cast %c0_i32_1 : i32 to index
    %c0_21 = arith.constant 0 : index
    %70 = vector.load %arg9[%c5, %69, %c0_21] : memref<6x8x32xf32, #tpu.memory_space<vmem>>, vector<1x1x32xf32>
    %71 = vector.shape_cast %70 : vector<1x1x32xf32> to vector<1x32xf32>
    %72 = vector.shape_cast %68 : vector<1x32xf32> to vector<1x1x32xf32>
    tpu.vector_store %arg9[%c5, %69, %c0_21], %72 {strides = array<i32>} : memref<6x8x32xf32, #tpu.memory_space<vmem>>, vector<1x1x32xf32>,
    %c1_i32_22 = arith.constant 1 : i32
    %73 = arith.addi %2, %c1_i32_22 : i32
    %74 = arith.index_cast %73 : i32 to index
    %75 = memref.load %arg2[%74] : memref<8xi32, #tpu.memory_space<smem>>
    %76 = arith.index_cast %73 : i32 to index
    %77 = memref.load %arg3[%76] : memref<8xi32, #tpu.memory_space<smem>>
    %78 = arith.index_cast %75 : i32 to index
    %c0_23 = arith.constant 0 : index
    %79 = vector.load %arg5[%78, %c0_23] : memref<100x32xf32, #tpu.memory_space<vmem>>, vector<1x32xf32>
    %80 = arith.index_cast %c1_i32_22 : i32 to index
    %c0_24 = arith.constant 0 : index
    %81 = vector.load %arg8[%80, %c0_24] : memref<8x32xf32, #tpu.memory_space<vmem>>, vector<1x32xf32>
    tpu.vector_store %arg8[%80, %c0_24], %79 {strides = array<i32>} : memref<8x32xf32, #tpu.memory_space<vmem>>, vector<1x32xf32>,
    %82 = arith.index_cast %77 : i32 to index
    %c0_25 = arith.constant 0 : index
    %83 = vector.load %arg6[%82, %c0_25] : memref<100x32xf32, #tpu.memory_space<vmem>>, vector<1x32xf32>
    %cst_26 = arith.constant 0.000000e+00 : f32
    %84 = vector.broadcast %cst_26 : f32 to vector<1x32xf32>
    %85 = arith.subf %84, %83 : vector<1x32xf32>
    %c0_27 = arith.constant 0 : index
    %86 = arith.index_cast %c1_i32_22 : i32 to index
    %c0_28 = arith.constant 0 : index
    %87 = vector.load %arg9[%c0_27, %86, %c0_28] : memref<6x8x32xf32, #tpu.memory_space<vmem>>, vector<1x1x32xf32>
    %88 = vector.shape_cast %87 : vector<1x1x32xf32> to vector<1x32xf32>
    %89 = vector.shape_cast %85 : vector<1x32xf32> to vector<1x1x32xf32>
    tpu.vector_store %arg9[%c0_27, %86, %c0_28], %89 {strides = array<i32>} : memref<6x8x32xf32, #tpu.memory_space<vmem>>, vector<1x1x32xf32>,
    %c5_i32_29 = arith.constant 5 : i32
    %90 = arith.muli %73, %c5_i32_29 : i32
    %c0_i32_30 = arith.constant 0 : i32
    %91 = arith.addi %90, %c0_i32_30 : i32
    %92 = arith.index_cast %91 : i32 to index
    %93 = memref.load %arg4[%92] : memref<40xi32, #tpu.memory_space<smem>>
    %94 = arith.index_cast %93 : i32 to index
    %c0_31 = arith.constant 0 : index
    %95 = vector.load %arg6[%94, %c0_31] : memref<100x32xf32, #tpu.memory_space<vmem>>, vector<1x32xf32>
    %c1_32 = arith.constant 1 : index
    %96 = arith.index_cast %c1_i32_22 : i32 to index
    %c0_33 = arith.constant 0 : index
    %97 = vector.load %arg9[%c1_32, %96, %c0_33] : memref<6x8x32xf32, #tpu.memory_space<vmem>>, vector<1x1x32xf32>
    %98 = vector.shape_cast %97 : vector<1x1x32xf32> to vector<1x32xf32>
    %99 = vector.shape_cast %95 : vector<1x32xf32> to vector<1x1x32xf32>
    tpu.vector_store %arg9[%c1_32, %96, %c0_33], %99 {strides = array<i32>} : memref<6x8x32xf32, #tpu.memory_space<vmem>>, vector<1x1x32xf32>,
    %c5_i32_34 = arith.constant 5 : i32
    %100 = arith.muli %73, %c5_i32_34 : i32
    %c1_i32_35 = arith.constant 1 : i32
    %101 = arith.addi %100, %c1_i32_35 : i32
    %102 = arith.index_cast %101 : i32 to index
    %103 = memref.load %arg4[%102] : memref<40xi32, #tpu.memory_space<smem>>
    %104 = arith.index_cast %103 : i32 to index
    %c0_36 = arith.constant 0 : index
    %105 = vector.load %arg6[%104, %c0_36] : memref<100x32xf32, #tpu.memory_space<vmem>>, vector<1x32xf32>
    %c2_37 = arith.constant 2 : index
    %106 = arith.index_cast %c1_i32_22 : i32 to index
    %c0_38 = arith.constant 0 : index
    %107 = vector.load %arg9[%c2_37, %106, %c0_38] : memref<6x8x32xf32, #tpu.memory_space<vmem>>, vector<1x1x32xf32>
    %108 = vector.shape_cast %107 : vector<1x1x32xf32> to vector<1x32xf32>
    %109 = vector.shape_cast %105 : vector<1x32xf32> to vector<1x1x32xf32>
    tpu.vector_store %arg9[%c2_37, %106, %c0_38], %109 {strides = array<i32>} : memref<6x8x32xf32, #tpu.memory_space<vmem>>, vector<1x1x32xf32>,
    %c5_i32_39 = arith.constant 5 : i32
    %110 = arith.muli %73, %c5_i32_39 : i32
    %c2_i32_40 = arith.constant 2 : i32
    %111 = arith.addi %110, %c2_i32_40 : i32
    %112 = arith.index_cast %111 : i32 to index
    %113 = memref.load %arg4[%112] : memref<40xi32, #tpu.memory_space<smem>>
    %114 = arith.index_cast %113 : i32 to index
    %c0_41 = arith.constant 0 : index
    %115 = vector.load %arg6[%114, %c0_41] : memref<100x32xf32, #tpu.memory_space<vmem>>, vector<1x32xf32>
    %c3_42 = arith.constant 3 : index
    %116 = arith.index_cast %c1_i32_22 : i32 to index
    %c0_43 = arith.constant 0 : index
    %117 = vector.load %arg9[%c3_42, %116, %c0_43] : memref<6x8x32xf32, #tpu.memory_space<vmem>>, vector<1x1x32xf32>
    %118 = vector.shape_cast %117 : vector<1x1x32xf32> to vector<1x32xf32>
    %119 = vector.shape_cast %115 : vector<1x32xf32> to vector<1x1x32xf32>
    tpu.vector_store %arg9[%c3_42, %116, %c0_43], %119 {strides = array<i32>} : memref<6x8x32xf32, #tpu.memory_space<vmem>>, vector<1x1x32xf32>,
    %c5_i32_44 = arith.constant 5 : i32
    %120 = arith.muli %73, %c5_i32_44 : i32
    %c3_i32_45 = arith.constant 3 : i32
    %121 = arith.addi %120, %c3_i32_45 : i32
    %122 = arith.index_cast %121 : i32 to index
    %123 = memref.load %arg4[%122] : memref<40xi32, #tpu.memory_space<smem>>
    %124 = arith.index_cast %123 : i32 to index
    %c0_46 = arith.constant 0 : index
    %125 = vector.load %arg6[%124, %c0_46] : memref<100x32xf32, #tpu.memory_space<vmem>>, vector<1x32xf32>
    %c4_47 = arith.constant 4 : index
    %126 = arith.index_cast %c1_i32_22 : i32 to index
    %c0_48 = arith.constant 0 : index
    %127 = vector.load %arg9[%c4_47, %126, %c0_48] : memref<6x8x32xf32, #tpu.memory_space<vmem>>, vector<1x1x32xf32>
    %128 = vector.shape_cast %127 : vector<1x1x32xf32> to vector<1x32xf32>
    %129 = vector.shape_cast %125 : vector<1x32xf32> to vector<1x1x32xf32>
    tpu.vector_store %arg9[%c4_47, %126, %c0_48], %129 {strides = array<i32>} : memref<6x8x32xf32, #tpu.memory_space<vmem>>, vector<1x1x32xf32>,
    %c5_i32_49 = arith.constant 5 : i32
    %130 = arith.muli %73, %c5_i32_49 : i32
    %c4_i32_50 = arith.constant 4 : i32
    %131 = arith.addi %130, %c4_i32_50 : i32
    %132 = arith.index_cast %131 : i32 to index
    %133 = memref.load %arg4[%132] : memref<40xi32, #tpu.memory_space<smem>>
    %134 = arith.index_cast %133 : i32 to index
    %c0_51 = arith.constant 0 : index
    %135 = vector.load %arg6[%134, %c0_51] : memref<100x32xf32, #tpu.memory_space<vmem>>, vector<1x32xf32>
    %c5_52 = arith.constant 5 : index
    %136 = arith.index_cast %c1_i32_22 : i32 to index
    %c0_53 = arith.constant 0 : index
    %137 = vector.load %arg9[%c5_52, %136, %c0_53] : memref<6x8x32xf32, #tpu.memory_space<vmem>>, vector<1x1x32xf32>
    %138 = vector.shape_cast %137 : vector<1x1x32xf32> to vector<1x32xf32>
    %139 = vector.shape_cast %135 : vector<1x32xf32> to vector<1x1x32xf32>
    tpu.vector_store %arg9[%c5_52, %136, %c0_53], %139 {strides = array<i32>} : memref<6x8x32xf32, #tpu.memory_space<vmem>>, vector<1x1x32xf32>,
    %c2_i32_54 = arith.constant 2 : i32
    %140 = arith.addi %2, %c2_i32_54 : i32
    %141 = arith.index_cast %140 : i32 to index
    %142 = memref.load %arg2[%141] : memref<8xi32, #tpu.memory_space<smem>>
    %143 = arith.index_cast %140 : i32 to index
    %144 = memref.load %arg3[%143] : memref<8xi32, #tpu.memory_space<smem>>
    %145 = arith.index_cast %142 : i32 to index
    %c0_55 = arith.constant 0 : index
    %146 = vector.load %arg5[%145, %c0_55] : memref<100x32xf32, #tpu.memory_space<vmem>>, vector<1x32xf32>
    %147 = arith.index_cast %c2_i32_54 : i32 to index
    %c0_56 = arith.constant 0 : index
    %148 = vector.load %arg8[%147, %c0_56] : memref<8x32xf32, #tpu.memory_space<vmem>>, vector<1x32xf32>
    tpu.vector_store %arg8[%147, %c0_56], %146 {strides = array<i32>} : memref<8x32xf32, #tpu.memory_space<vmem>>, vector<1x32xf32>,
    %149 = arith.index_cast %144 : i32 to index
    %c0_57 = arith.constant 0 : index
    %150 = vector.load %arg6[%149, %c0_57] : memref<100x32xf32, #tpu.memory_space<vmem>>, vector<1x32xf32>
    %cst_58 = arith.constant 0.000000e+00 : f32
    %151 = vector.broadcast %cst_58 : f32 to vector<1x32xf32>
    %152 = arith.subf %151, %150 : vector<1x32xf32>
    %c0_59 = arith.constant 0 : index
    %153 = arith.index_cast %c2_i32_54 : i32 to index
    %c0_60 = arith.constant 0 : index
    %154 = vector.load %arg9[%c0_59, %153, %c0_60] : memref<6x8x32xf32, #tpu.memory_space<vmem>>, vector<1x1x32xf32>
    %155 = vector.shape_cast %154 : vector<1x1x32xf32> to vector<1x32xf32>
    %156 = vector.shape_cast %152 : vector<1x32xf32> to vector<1x1x32xf32>
    tpu.vector_store %arg9[%c0_59, %153, %c0_60], %156 {strides = array<i32>} : memref<6x8x32xf32, #tpu.memory_space<vmem>>, vector<1x1x32xf32>,
    %c5_i32_61 = arith.constant 5 : i32
    %157 = arith.muli %140, %c5_i32_61 : i32
    %c0_i32_62 = arith.constant 0 : i32
    %158 = arith.addi %157, %c0_i32_62 : i32
    %159 = arith.index_cast %158 : i32 to index
    %160 = memref.load %arg4[%159] : memref<40xi32, #tpu.memory_space<smem>>
    %161 = arith.index_cast %160 : i32 to index
    %c0_63 = arith.constant 0 : index
    %162 = vector.load %arg6[%161, %c0_63] : memref<100x32xf32, #tpu.memory_space<vmem>>, vector<1x32xf32>
    %c1_64 = arith.constant 1 : index
    %163 = arith.index_cast %c2_i32_54 : i32 to index
    %c0_65 = arith.constant 0 : index
    %164 = vector.load %arg9[%c1_64, %163, %c0_65] : memref<6x8x32xf32, #tpu.memory_space<vmem>>, vector<1x1x32xf32>
    %165 = vector.shape_cast %164 : vector<1x1x32xf32> to vector<1x32xf32>
    %166 = vector.shape_cast %162 : vector<1x32xf32> to vector<1x1x32xf32>
    tpu.vector_store %arg9[%c1_64, %163, %c0_65], %166 {strides = array<i32>} : memref<6x8x32xf32, #tpu.memory_space<vmem>>, vector<1x1x32xf32>,
    %c5_i32_66 = arith.constant 5 : i32
    %167 = arith.muli %140, %c5_i32_66 : i32
    %c1_i32_67 = arith.constant 1 : i32
    %168 = arith.addi %167, %c1_i32_67 : i32
    %169 = arith.index_cast %168 : i32 to index
    %170 = memref.load %arg4[%169] : memref<40xi32, #tpu.memory_space<smem>>
    %171 = arith.index_cast %170 : i32 to index
    %c0_68 = arith.constant 0 : index
    %172 = vector.load %arg6[%171, %c0_68] : memref<100x32xf32, #tpu.memory_space<vmem>>, vector<1x32xf32>
    %c2_69 = arith.constant 2 : index
    %173 = arith.index_cast %c2_i32_54 : i32 to index
    %c0_70 = arith.constant 0 : index
    %174 = vector.load %arg9[%c2_69, %173, %c0_70] : memref<6x8x32xf32, #tpu.memory_space<vmem>>, vector<1x1x32xf32>
    %175 = vector.shape_cast %174 : vector<1x1x32xf32> to vector<1x32xf32>
    %176 = vector.shape_cast %172 : vector<1x32xf32> to vector<1x1x32xf32>
    tpu.vector_store %arg9[%c2_69, %173, %c0_70], %176 {strides = array<i32>} : memref<6x8x32xf32, #tpu.memory_space<vmem>>, vector<1x1x32xf32>,
    %c5_i32_71 = arith.constant 5 : i32
    %177 = arith.muli %140, %c5_i32_71 : i32
    %c2_i32_72 = arith.constant 2 : i32
    %178 = arith.addi %177, %c2_i32_72 : i32
    %179 = arith.index_cast %178 : i32 to index
    %180 = memref.load %arg4[%179] : memref<40xi32, #tpu.memory_space<smem>>
    %181 = arith.index_cast %180 : i32 to index
    %c0_73 = arith.constant 0 : index
    %182 = vector.load %arg6[%181, %c0_73] : memref<100x32xf32, #tpu.memory_space<vmem>>, vector<1x32xf32>
    %c3_74 = arith.constant 3 : index
    %183 = arith.index_cast %c2_i32_54 : i32 to index
    %c0_75 = arith.constant 0 : index
    %184 = vector.load %arg9[%c3_74, %183, %c0_75] : memref<6x8x32xf32, #tpu.memory_space<vmem>>, vector<1x1x32xf32>
    %185 = vector.shape_cast %184 : vector<1x1x32xf32> to vector<1x32xf32>
    %186 = vector.shape_cast %182 : vector<1x32xf32> to vector<1x1x32xf32>
    tpu.vector_store %arg9[%c3_74, %183, %c0_75], %186 {strides = array<i32>} : memref<6x8x32xf32, #tpu.memory_space<vmem>>, vector<1x1x32xf32>,
    %c5_i32_76 = arith.constant 5 : i32
    %187 = arith.muli %140, %c5_i32_76 : i32
    %c3_i32_77 = arith.constant 3 : i32
    %188 = arith.addi %187, %c3_i32_77 : i32
    %189 = arith.index_cast %188 : i32 to index
    %190 = memref.load %arg4[%189] : memref<40xi32, #tpu.memory_space<smem>>
    %191 = arith.index_cast %190 : i32 to index
    %c0_78 = arith.constant 0 : index
    %192 = vector.load %arg6[%191, %c0_78] : memref<100x32xf32, #tpu.memory_space<vmem>>, vector<1x32xf32>
    %c4_79 = arith.constant 4 : index
    %193 = arith.index_cast %c2_i32_54 : i32 to index
    %c0_80 = arith.constant 0 : index
    %194 = vector.load %arg9[%c4_79, %193, %c0_80] : memref<6x8x32xf32, #tpu.memory_space<vmem>>, vector<1x1x32xf32>
    %195 = vector.shape_cast %194 : vector<1x1x32xf32> to vector<1x32xf32>
    %196 = vector.shape_cast %192 : vector<1x32xf32> to vector<1x1x32xf32>
    tpu.vector_store %arg9[%c4_79, %193, %c0_80], %196 {strides = array<i32>} : memref<6x8x32xf32, #tpu.memory_space<vmem>>, vector<1x1x32xf32>,
    %c5_i32_81 = arith.constant 5 : i32
    %197 = arith.muli %140, %c5_i32_81 : i32
    %c4_i32_82 = arith.constant 4 : i32
    %198 = arith.addi %197, %c4_i32_82 : i32
    %199 = arith.index_cast %198 : i32 to index
    %200 = memref.load %arg4[%199] : memref<40xi32, #tpu.memory_space<smem>>
    %201 = arith.index_cast %200 : i32 to index
    %c0_83 = arith.constant 0 : index
    %202 = vector.load %arg6[%201, %c0_83] : memref<100x32xf32, #tpu.memory_space<vmem>>, vector<1x32xf32>
    %c5_84 = arith.constant 5 : index
    %203 = arith.index_cast %c2_i32_54 : i32 to index
    %c0_85 = arith.constant 0 : index
    %204 = vector.load %arg9[%c5_84, %203, %c0_85] : memref<6x8x32xf32, #tpu.memory_space<vmem>>, vector<1x1x32xf32>
    %205 = vector.shape_cast %204 : vector<1x1x32xf32> to vector<1x32xf32>
    %206 = vector.shape_cast %202 : vector<1x32xf32> to vector<1x1x32xf32>
    tpu.vector_store %arg9[%c5_84, %203, %c0_85], %206 {strides = array<i32>} : memref<6x8x32xf32, #tpu.memory_space<vmem>>, vector<1x1x32xf32>,
    %c3_i32_86 = arith.constant 3 : i32
    %207 = arith.addi %2, %c3_i32_86 : i32
    %208 = arith.index_cast %207 : i32 to index
    %209 = memref.load %arg2[%208] : memref<8xi32, #tpu.memory_space<smem>>
    %210 = arith.index_cast %207 : i32 to index
    %211 = memref.load %arg3[%210] : memref<8xi32, #tpu.memory_space<smem>>
    %212 = arith.index_cast %209 : i32 to index
    %c0_87 = arith.constant 0 : index
    %213 = vector.load %arg5[%212, %c0_87] : memref<100x32xf32, #tpu.memory_space<vmem>>, vector<1x32xf32>
    %214 = arith.index_cast %c3_i32_86 : i32 to index
    %c0_88 = arith.constant 0 : index
    %215 = vector.load %arg8[%214, %c0_88] : memref<8x32xf32, #tpu.memory_space<vmem>>, vector<1x32xf32>
    tpu.vector_store %arg8[%214, %c0_88], %213 {strides = array<i32>} : memref<8x32xf32, #tpu.memory_space<vmem>>, vector<1x32xf32>,
    %216 = arith.index_cast %211 : i32 to index
    %c0_89 = arith.constant 0 : index
    %217 = vector.load %arg6[%216, %c0_89] : memref<100x32xf32, #tpu.memory_space<vmem>>, vector<1x32xf32>
    %cst_90 = arith.constant 0.000000e+00 : f32
    %218 = vector.broadcast %cst_90 : f32 to vector<1x32xf32>
    %219 = arith.subf %218, %217 : vector<1x32xf32>
    %c0_91 = arith.constant 0 : index
    %220 = arith.index_cast %c3_i32_86 : i32 to index
    %c0_92 = arith.constant 0 : index
    %221 = vector.load %arg9[%c0_91, %220, %c0_92] : memref<6x8x32xf32, #tpu.memory_space<vmem>>, vector<1x1x32xf32>
    %222 = vector.shape_cast %221 : vector<1x1x32xf32> to vector<1x32xf32>
    %223 = vector.shape_cast %219 : vector<1x32xf32> to vector<1x1x32xf32>
    tpu.vector_store %arg9[%c0_91, %220, %c0_92], %223 {strides = array<i32>} : memref<6x8x32xf32, #tpu.memory_space<vmem>>, vector<1x1x32xf32>,
    %c5_i32_93 = arith.constant 5 : i32
    %224 = arith.muli %207, %c5_i32_93 : i32
    %c0_i32_94 = arith.constant 0 : i32
    %225 = arith.addi %224, %c0_i32_94 : i32
    %226 = arith.index_cast %225 : i32 to index
    %227 = memref.load %arg4[%226] : memref<40xi32, #tpu.memory_space<smem>>
    %228 = arith.index_cast %227 : i32 to index
    %c0_95 = arith.constant 0 : index
    %229 = vector.load %arg6[%228, %c0_95] : memref<100x32xf32, #tpu.memory_space<vmem>>, vector<1x32xf32>
    %c1_96 = arith.constant 1 : index
    %230 = arith.index_cast %c3_i32_86 : i32 to index
    %c0_97 = arith.constant 0 : index
    %231 = vector.load %arg9[%c1_96, %230, %c0_97] : memref<6x8x32xf32, #tpu.memory_space<vmem>>, vector<1x1x32xf32>
    %232 = vector.shape_cast %231 : vector<1x1x32xf32> to vector<1x32xf32>
    %233 = vector.shape_cast %229 : vector<1x32xf32> to vector<1x1x32xf32>
    tpu.vector_store %arg9[%c1_96, %230, %c0_97], %233 {strides = array<i32>} : memref<6x8x32xf32, #tpu.memory_space<vmem>>, vector<1x1x32xf32>,
    %c5_i32_98 = arith.constant 5 : i32
    %234 = arith.muli %207, %c5_i32_98 : i32
    %c1_i32_99 = arith.constant 1 : i32
    %235 = arith.addi %234, %c1_i32_99 : i32
    %236 = arith.index_cast %235 : i32 to index
    %237 = memref.load %arg4[%236] : memref<40xi32, #tpu.memory_space<smem>>
    %238 = arith.index_cast %237 : i32 to index
    %c0_100 = arith.constant 0 : index
    %239 = vector.load %arg6[%238, %c0_100] : memref<100x32xf32, #tpu.memory_space<vmem>>, vector<1x32xf32>
    %c2_101 = arith.constant 2 : index
    %240 = arith.index_cast %c3_i32_86 : i32 to index
    %c0_102 = arith.constant 0 : index
    %241 = vector.load %arg9[%c2_101, %240, %c0_102] : memref<6x8x32xf32, #tpu.memory_space<vmem>>, vector<1x1x32xf32>
    %242 = vector.shape_cast %241 : vector<1x1x32xf32> to vector<1x32xf32>
    %243 = vector.shape_cast %239 : vector<1x32xf32> to vector<1x1x32xf32>
    tpu.vector_store %arg9[%c2_101, %240, %c0_102], %243 {strides = array<i32>} : memref<6x8x32xf32, #tpu.memory_space<vmem>>, vector<1x1x32xf32>,
    %c5_i32_103 = arith.constant 5 : i32
    %244 = arith.muli %207, %c5_i32_103 : i32
    %c2_i32_104 = arith.constant 2 : i32
    %245 = arith.addi %244, %c2_i32_104 : i32
    %246 = arith.index_cast %245 : i32 to index
    %247 = memref.load %arg4[%246] : memref<40xi32, #tpu.memory_space<smem>>
    %248 = arith.index_cast %247 : i32 to index
    %c0_105 = arith.constant 0 : index
    %249 = vector.load %arg6[%248, %c0_105] : memref<100x32xf32, #tpu.memory_space<vmem>>, vector<1x32xf32>
    %c3_106 = arith.constant 3 : index
    %250 = arith.index_cast %c3_i32_86 : i32 to index
    %c0_107 = arith.constant 0 : index
    %251 = vector.load %arg9[%c3_106, %250, %c0_107] : memref<6x8x32xf32, #tpu.memory_space<vmem>>, vector<1x1x32xf32>
    %252 = vector.shape_cast %251 : vector<1x1x32xf32> to vector<1x32xf32>
    %253 = vector.shape_cast %249 : vector<1x32xf32> to vector<1x1x32xf32>
    tpu.vector_store %arg9[%c3_106, %250, %c0_107], %253 {strides = array<i32>} : memref<6x8x32xf32, #tpu.memory_space<vmem>>, vector<1x1x32xf32>,
    %c5_i32_108 = arith.constant 5 : i32
    %254 = arith.muli %207, %c5_i32_108 : i32
    %c3_i32_109 = arith.constant 3 : i32
    %255 = arith.addi %254, %c3_i32_109 : i32
    %256 = arith.index_cast %255 : i32 to index
    %257 = memref.load %arg4[%256] : memref<40xi32, #tpu.memory_space<smem>>
    %258 = arith.index_cast %257 : i32 to index
    %c0_110 = arith.constant 0 : index
    %259 = vector.load %arg6[%258, %c0_110] : memref<100x32xf32, #tpu.memory_space<vmem>>, vector<1x32xf32>
    %c4_111 = arith.constant 4 : index
    %260 = arith.index_cast %c3_i32_86 : i32 to index
    %c0_112 = arith.constant 0 : index
    %261 = vector.load %arg9[%c4_111, %260, %c0_112] : memref<6x8x32xf32, #tpu.memory_space<vmem>>, vector<1x1x32xf32>
    %262 = vector.shape_cast %261 : vector<1x1x32xf32> to vector<1x32xf32>
    %263 = vector.shape_cast %259 : vector<1x32xf32> to vector<1x1x32xf32>
    tpu.vector_store %arg9[%c4_111, %260, %c0_112], %263 {strides = array<i32>} : memref<6x8x32xf32, #tpu.memory_space<vmem>>, vector<1x1x32xf32>,
    %c5_i32_113 = arith.constant 5 : i32
    %264 = arith.muli %207, %c5_i32_113 : i32
    %c4_i32_114 = arith.constant 4 : i32
    %265 = arith.addi %264, %c4_i32_114 : i32
    %266 = arith.index_cast %265 : i32 to index
    %267 = memref.load %arg4[%266] : memref<40xi32, #tpu.memory_space<smem>>
    %268 = arith.index_cast %267 : i32 to index
    %c0_115 = arith.constant 0 : index
    %269 = vector.load %arg6[%268, %c0_115] : memref<100x32xf32, #tpu.memory_space<vmem>>, vector<1x32xf32>
    %c5_116 = arith.constant 5 : index
    %270 = arith.index_cast %c3_i32_86 : i32 to index
    %c0_117 = arith.constant 0 : index
    %271 = vector.load %arg9[%c5_116, %270, %c0_117] : memref<6x8x32xf32, #tpu.memory_space<vmem>>, vector<1x1x32xf32>
    %272 = vector.shape_cast %271 : vector<1x1x32xf32> to vector<1x32xf32>
    %273 = vector.shape_cast %269 : vector<1x32xf32> to vector<1x1x32xf32>
    tpu.vector_store %arg9[%c5_116, %270, %c0_117], %273 {strides = array<i32>} : memref<6x8x32xf32, #tpu.memory_space<vmem>>, vector<1x1x32xf32>,
    %c4_i32_118 = arith.constant 4 : i32
    %274 = arith.addi %2, %c4_i32_118 : i32
    %275 = arith.index_cast %274 : i32 to index
    %276 = memref.load %arg2[%275] : memref<8xi32, #tpu.memory_space<smem>>
    %277 = arith.index_cast %274 : i32 to index
    %278 = memref.load %arg3[%277] : memref<8xi32, #tpu.memory_space<smem>>
    %279 = arith.index_cast %276 : i32 to index
    %c0_119 = arith.constant 0 : index
    %280 = vector.load %arg5[%279, %c0_119] : memref<100x32xf32, #tpu.memory_space<vmem>>, vector<1x32xf32>
    %281 = arith.index_cast %c4_i32_118 : i32 to index
    %c0_120 = arith.constant 0 : index
    %282 = vector.load %arg8[%281, %c0_120] : memref<8x32xf32, #tpu.memory_space<vmem>>, vector<1x32xf32>
    tpu.vector_store %arg8[%281, %c0_120], %280 {strides = array<i32>} : memref<8x32xf32, #tpu.memory_space<vmem>>, vector<1x32xf32>,
    %283 = arith.index_cast %278 : i32 to index
    %c0_121 = arith.constant 0 : index
    %284 = vector.load %arg6[%283, %c0_121] : memref<100x32xf32, #tpu.memory_space<vmem>>, vector<1x32xf32>
    %cst_122 = arith.constant 0.000000e+00 : f32
    %285 = vector.broadcast %cst_122 : f32 to vector<1x32xf32>
    %286 = arith.subf %285, %284 : vector<1x32xf32>
    %c0_123 = arith.constant 0 : index
    %287 = arith.index_cast %c4_i32_118 : i32 to index
    %c0_124 = arith.constant 0 : index
    %288 = vector.load %arg9[%c0_123, %287, %c0_124] : memref<6x8x32xf32, #tpu.memory_space<vmem>>, vector<1x1x32xf32>
    %289 = vector.shape_cast %288 : vector<1x1x32xf32> to vector<1x32xf32>
    %290 = vector.shape_cast %286 : vector<1x32xf32> to vector<1x1x32xf32>
    tpu.vector_store %arg9[%c0_123, %287, %c0_124], %290 {strides = array<i32>} : memref<6x8x32xf32, #tpu.memory_space<vmem>>, vector<1x1x32xf32>,
    %c5_i32_125 = arith.constant 5 : i32
    %291 = arith.muli %274, %c5_i32_125 : i32
    %c0_i32_126 = arith.constant 0 : i32
    %292 = arith.addi %291, %c0_i32_126 : i32
    %293 = arith.index_cast %292 : i32 to index
    %294 = memref.load %arg4[%293] : memref<40xi32, #tpu.memory_space<smem>>
    %295 = arith.index_cast %294 : i32 to index
    %c0_127 = arith.constant 0 : index
    %296 = vector.load %arg6[%295, %c0_127] : memref<100x32xf32, #tpu.memory_space<vmem>>, vector<1x32xf32>
    %c1_128 = arith.constant 1 : index
    %297 = arith.index_cast %c4_i32_118 : i32 to index
    %c0_129 = arith.constant 0 : index
    %298 = vector.load %arg9[%c1_128, %297, %c0_129] : memref<6x8x32xf32, #tpu.memory_space<vmem>>, vector<1x1x32xf32>
    %299 = vector.shape_cast %298 : vector<1x1x32xf32> to vector<1x32xf32>
    %300 = vector.shape_cast %296 : vector<1x32xf32> to vector<1x1x32xf32>
    tpu.vector_store %arg9[%c1_128, %297, %c0_129], %300 {strides = array<i32>} : memref<6x8x32xf32, #tpu.memory_space<vmem>>, vector<1x1x32xf32>,
    %c5_i32_130 = arith.constant 5 : i32
    %301 = arith.muli %274, %c5_i32_130 : i32
    %c1_i32_131 = arith.constant 1 : i32
    %302 = arith.addi %301, %c1_i32_131 : i32
    %303 = arith.index_cast %302 : i32 to index
    %304 = memref.load %arg4[%303] : memref<40xi32, #tpu.memory_space<smem>>
    %305 = arith.index_cast %304 : i32 to index
    %c0_132 = arith.constant 0 : index
    %306 = vector.load %arg6[%305, %c0_132] : memref<100x32xf32, #tpu.memory_space<vmem>>, vector<1x32xf32>
    %c2_133 = arith.constant 2 : index
    %307 = arith.index_cast %c4_i32_118 : i32 to index
    %c0_134 = arith.constant 0 : index
    %308 = vector.load %arg9[%c2_133, %307, %c0_134] : memref<6x8x32xf32, #tpu.memory_space<vmem>>, vector<1x1x32xf32>
    %309 = vector.shape_cast %308 : vector<1x1x32xf32> to vector<1x32xf32>
    %310 = vector.shape_cast %306 : vector<1x32xf32> to vector<1x1x32xf32>
    tpu.vector_store %arg9[%c2_133, %307, %c0_134], %310 {strides = array<i32>} : memref<6x8x32xf32, #tpu.memory_space<vmem>>, vector<1x1x32xf32>,
    %c5_i32_135 = arith.constant 5 : i32
    %311 = arith.muli %274, %c5_i32_135 : i32
    %c2_i32_136 = arith.constant 2 : i32
    %312 = arith.addi %311, %c2_i32_136 : i32
    %313 = arith.index_cast %312 : i32 to index
    %314 = memref.load %arg4[%313] : memref<40xi32, #tpu.memory_space<smem>>
    %315 = arith.index_cast %314 : i32 to index
    %c0_137 = arith.constant 0 : index
    %316 = vector.load %arg6[%315, %c0_137] : memref<100x32xf32, #tpu.memory_space<vmem>>, vector<1x32xf32>
    %c3_138 = arith.constant 3 : index
    %317 = arith.index_cast %c4_i32_118 : i32 to index
    %c0_139 = arith.constant 0 : index
    %318 = vector.load %arg9[%c3_138, %317, %c0_139] : memref<6x8x32xf32, #tpu.memory_space<vmem>>, vector<1x1x32xf32>
    %319 = vector.shape_cast %318 : vector<1x1x32xf32> to vector<1x32xf32>
    %320 = vector.shape_cast %316 : vector<1x32xf32> to vector<1x1x32xf32>
    tpu.vector_store %arg9[%c3_138, %317, %c0_139], %320 {strides = array<i32>} : memref<6x8x32xf32, #tpu.memory_space<vmem>>, vector<1x1x32xf32>,
    %c5_i32_140 = arith.constant 5 : i32
    %321 = arith.muli %274, %c5_i32_140 : i32
    %c3_i32_141 = arith.constant 3 : i32
    %322 = arith.addi %321, %c3_i32_141 : i32
    %323 = arith.index_cast %322 : i32 to index
    %324 = memref.load %arg4[%323] : memref<40xi32, #tpu.memory_space<smem>>
    %325 = arith.index_cast %324 : i32 to index
    %c0_142 = arith.constant 0 : index
    %326 = vector.load %arg6[%325, %c0_142] : memref<100x32xf32, #tpu.memory_space<vmem>>, vector<1x32xf32>
    %c4_143 = arith.constant 4 : index
    %327 = arith.index_cast %c4_i32_118 : i32 to index
    %c0_144 = arith.constant 0 : index
    %328 = vector.load %arg9[%c4_143, %327, %c0_144] : memref<6x8x32xf32, #tpu.memory_space<vmem>>, vector<1x1x32xf32>
    %329 = vector.shape_cast %328 : vector<1x1x32xf32> to vector<1x32xf32>
    %330 = vector.shape_cast %326 : vector<1x32xf32> to vector<1x1x32xf32>
    tpu.vector_store %arg9[%c4_143, %327, %c0_144], %330 {strides = array<i32>} : memref<6x8x32xf32, #tpu.memory_space<vmem>>, vector<1x1x32xf32>,
    %c5_i32_145 = arith.constant 5 : i32
    %331 = arith.muli %274, %c5_i32_145 : i32
    %c4_i32_146 = arith.constant 4 : i32
    %332 = arith.addi %331, %c4_i32_146 : i32
    %333 = arith.index_cast %332 : i32 to index
    %334 = memref.load %arg4[%333] : memref<40xi32, #tpu.memory_space<smem>>
    %335 = arith.index_cast %334 : i32 to index
    %c0_147 = arith.constant 0 : index
    %336 = vector.load %arg6[%335, %c0_147] : memref<100x32xf32, #tpu.memory_space<vmem>>, vector<1x32xf32>
    %c5_148 = arith.constant 5 : index
    %337 = arith.index_cast %c4_i32_118 : i32 to index
    %c0_149 = arith.constant 0 : index
    %338 = vector.load %arg9[%c5_148, %337, %c0_149] : memref<6x8x32xf32, #tpu.memory_space<vmem>>, vector<1x1x32xf32>
    %339 = vector.shape_cast %338 : vector<1x1x32xf32> to vector<1x32xf32>
    %340 = vector.shape_cast %336 : vector<1x32xf32> to vector<1x1x32xf32>
    tpu.vector_store %arg9[%c5_148, %337, %c0_149], %340 {strides = array<i32>} : memref<6x8x32xf32, #tpu.memory_space<vmem>>, vector<1x1x32xf32>,
    %c5_i32_150 = arith.constant 5 : i32
    %341 = arith.addi %2, %c5_i32_150 : i32
    %342 = arith.index_cast %341 : i32 to index
    %343 = memref.load %arg2[%342] : memref<8xi32, #tpu.memory_space<smem>>
    %344 = arith.index_cast %341 : i32 to index
    %345 = memref.load %arg3[%344] : memref<8xi32, #tpu.memory_space<smem>>
    %346 = arith.index_cast %343 : i32 to index
    %c0_151 = arith.constant 0 : index
    %347 = vector.load %arg5[%346, %c0_151] : memref<100x32xf32, #tpu.memory_space<vmem>>, vector<1x32xf32>
    %348 = arith.index_cast %c5_i32_150 : i32 to index
    %c0_152 = arith.constant 0 : index
    %349 = vector.load %arg8[%348, %c0_152] : memref<8x32xf32, #tpu.memory_space<vmem>>, vector<1x32xf32>
    tpu.vector_store %arg8[%348, %c0_152], %347 {strides = array<i32>} : memref<8x32xf32, #tpu.memory_space<vmem>>, vector<1x32xf32>,
    %350 = arith.index_cast %345 : i32 to index
    %c0_153 = arith.constant 0 : index
    %351 = vector.load %arg6[%350, %c0_153] : memref<100x32xf32, #tpu.memory_space<vmem>>, vector<1x32xf32>
    %cst_154 = arith.constant 0.000000e+00 : f32
    %352 = vector.broadcast %cst_154 : f32 to vector<1x32xf32>
    %353 = arith.subf %352, %351 : vector<1x32xf32>
    %c0_155 = arith.constant 0 : index
    %354 = arith.index_cast %c5_i32_150 : i32 to index
    %c0_156 = arith.constant 0 : index
    %355 = vector.load %arg9[%c0_155, %354, %c0_156] : memref<6x8x32xf32, #tpu.memory_space<vmem>>, vector<1x1x32xf32>
    %356 = vector.shape_cast %355 : vector<1x1x32xf32> to vector<1x32xf32>
    %357 = vector.shape_cast %353 : vector<1x32xf32> to vector<1x1x32xf32>
    tpu.vector_store %arg9[%c0_155, %354, %c0_156], %357 {strides = array<i32>} : memref<6x8x32xf32, #tpu.memory_space<vmem>>, vector<1x1x32xf32>,
    %c5_i32_157 = arith.constant 5 : i32
    %358 = arith.muli %341, %c5_i32_157 : i32
    %c0_i32_158 = arith.constant 0 : i32
    %359 = arith.addi %358, %c0_i32_158 : i32
    %360 = arith.index_cast %359 : i32 to index
    %361 = memref.load %arg4[%360] : memref<40xi32, #tpu.memory_space<smem>>
    %362 = arith.index_cast %361 : i32 to index
    %c0_159 = arith.constant 0 : index
    %363 = vector.load %arg6[%362, %c0_159] : memref<100x32xf32, #tpu.memory_space<vmem>>, vector<1x32xf32>
    %c1_160 = arith.constant 1 : index
    %364 = arith.index_cast %c5_i32_150 : i32 to index
    %c0_161 = arith.constant 0 : index
    %365 = vector.load %arg9[%c1_160, %364, %c0_161] : memref<6x8x32xf32, #tpu.memory_space<vmem>>, vector<1x1x32xf32>
    %366 = vector.shape_cast %365 : vector<1x1x32xf32> to vector<1x32xf32>
    %367 = vector.shape_cast %363 : vector<1x32xf32> to vector<1x1x32xf32>
    tpu.vector_store %arg9[%c1_160, %364, %c0_161], %367 {strides = array<i32>} : memref<6x8x32xf32, #tpu.memory_space<vmem>>, vector<1x1x32xf32>,
    %c5_i32_162 = arith.constant 5 : i32
    %368 = arith.muli %341, %c5_i32_162 : i32
    %c1_i32_163 = arith.constant 1 : i32
    %369 = arith.addi %368, %c1_i32_163 : i32
    %370 = arith.index_cast %369 : i32 to index
    %371 = memref.load %arg4[%370] : memref<40xi32, #tpu.memory_space<smem>>
    %372 = arith.index_cast %371 : i32 to index
    %c0_164 = arith.constant 0 : index
    %373 = vector.load %arg6[%372, %c0_164] : memref<100x32xf32, #tpu.memory_space<vmem>>, vector<1x32xf32>
    %c2_165 = arith.constant 2 : index
    %374 = arith.index_cast %c5_i32_150 : i32 to index
    %c0_166 = arith.constant 0 : index
    %375 = vector.load %arg9[%c2_165, %374, %c0_166] : memref<6x8x32xf32, #tpu.memory_space<vmem>>, vector<1x1x32xf32>
    %376 = vector.shape_cast %375 : vector<1x1x32xf32> to vector<1x32xf32>
    %377 = vector.shape_cast %373 : vector<1x32xf32> to vector<1x1x32xf32>
    tpu.vector_store %arg9[%c2_165, %374, %c0_166], %377 {strides = array<i32>} : memref<6x8x32xf32, #tpu.memory_space<vmem>>, vector<1x1x32xf32>,
    %c5_i32_167 = arith.constant 5 : i32
    %378 = arith.muli %341, %c5_i32_167 : i32
    %c2_i32_168 = arith.constant 2 : i32
    %379 = arith.addi %378, %c2_i32_168 : i32
    %380 = arith.index_cast %379 : i32 to index
    %381 = memref.load %arg4[%380] : memref<40xi32, #tpu.memory_space<smem>>
    %382 = arith.index_cast %381 : i32 to index
    %c0_169 = arith.constant 0 : index
    %383 = vector.load %arg6[%382, %c0_169] : memref<100x32xf32, #tpu.memory_space<vmem>>, vector<1x32xf32>
    %c3_170 = arith.constant 3 : index
    %384 = arith.index_cast %c5_i32_150 : i32 to index
    %c0_171 = arith.constant 0 : index
    %385 = vector.load %arg9[%c3_170, %384, %c0_171] : memref<6x8x32xf32, #tpu.memory_space<vmem>>, vector<1x1x32xf32>
    %386 = vector.shape_cast %385 : vector<1x1x32xf32> to vector<1x32xf32>
    %387 = vector.shape_cast %383 : vector<1x32xf32> to vector<1x1x32xf32>
    tpu.vector_store %arg9[%c3_170, %384, %c0_171], %387 {strides = array<i32>} : memref<6x8x32xf32, #tpu.memory_space<vmem>>, vector<1x1x32xf32>,
    %c5_i32_172 = arith.constant 5 : i32
    %388 = arith.muli %341, %c5_i32_172 : i32
    %c3_i32_173 = arith.constant 3 : i32
    %389 = arith.addi %388, %c3_i32_173 : i32
    %390 = arith.index_cast %389 : i32 to index
    %391 = memref.load %arg4[%390] : memref<40xi32, #tpu.memory_space<smem>>
    %392 = arith.index_cast %391 : i32 to index
    %c0_174 = arith.constant 0 : index
    %393 = vector.load %arg6[%392, %c0_174] : memref<100x32xf32, #tpu.memory_space<vmem>>, vector<1x32xf32>
    %c4_175 = arith.constant 4 : index
    %394 = arith.index_cast %c5_i32_150 : i32 to index
    %c0_176 = arith.constant 0 : index
    %395 = vector.load %arg9[%c4_175, %394, %c0_176] : memref<6x8x32xf32, #tpu.memory_space<vmem>>, vector<1x1x32xf32>
    %396 = vector.shape_cast %395 : vector<1x1x32xf32> to vector<1x32xf32>
    %397 = vector.shape_cast %393 : vector<1x32xf32> to vector<1x1x32xf32>
    tpu.vector_store %arg9[%c4_175, %394, %c0_176], %397 {strides = array<i32>} : memref<6x8x32xf32, #tpu.memory_space<vmem>>, vector<1x1x32xf32>,
    %c5_i32_177 = arith.constant 5 : i32
    %398 = arith.muli %341, %c5_i32_177 : i32
    %c4_i32_178 = arith.constant 4 : i32
    %399 = arith.addi %398, %c4_i32_178 : i32
    %400 = arith.index_cast %399 : i32 to index
    %401 = memref.load %arg4[%400] : memref<40xi32, #tpu.memory_space<smem>>
    %402 = arith.index_cast %401 : i32 to index
    %c0_179 = arith.constant 0 : index
    %403 = vector.load %arg6[%402, %c0_179] : memref<100x32xf32, #tpu.memory_space<vmem>>, vector<1x32xf32>
    %c5_180 = arith.constant 5 : index
    %404 = arith.index_cast %c5_i32_150 : i32 to index
    %c0_181 = arith.constant 0 : index
    %405 = vector.load %arg9[%c5_180, %404, %c0_181] : memref<6x8x32xf32, #tpu.memory_space<vmem>>, vector<1x1x32xf32>
    %406 = vector.shape_cast %405 : vector<1x1x32xf32> to vector<1x32xf32>
    %407 = vector.shape_cast %403 : vector<1x32xf32> to vector<1x1x32xf32>
    tpu.vector_store %arg9[%c5_180, %404, %c0_181], %407 {strides = array<i32>} : memref<6x8x32xf32, #tpu.memory_space<vmem>>, vector<1x1x32xf32>,
    %c6_i32 = arith.constant 6 : i32
    %408 = arith.addi %2, %c6_i32 : i32
    %409 = arith.index_cast %408 : i32 to index
    %410 = memref.load %arg2[%409] : memref<8xi32, #tpu.memory_space<smem>>
    %411 = arith.index_cast %408 : i32 to index
    %412 = memref.load %arg3[%411] : memref<8xi32, #tpu.memory_space<smem>>
    %413 = arith.index_cast %410 : i32 to index
    %c0_182 = arith.constant 0 : index
    %414 = vector.load %arg5[%413, %c0_182] : memref<100x32xf32, #tpu.memory_space<vmem>>, vector<1x32xf32>
    %415 = arith.index_cast %c6_i32 : i32 to index
    %c0_183 = arith.constant 0 : index
    %416 = vector.load %arg8[%415, %c0_183] : memref<8x32xf32, #tpu.memory_space<vmem>>, vector<1x32xf32>
    tpu.vector_store %arg8[%415, %c0_183], %414 {strides = array<i32>} : memref<8x32xf32, #tpu.memory_space<vmem>>, vector<1x32xf32>,
    %417 = arith.index_cast %412 : i32 to index
    %c0_184 = arith.constant 0 : index
    %418 = vector.load %arg6[%417, %c0_184] : memref<100x32xf32, #tpu.memory_space<vmem>>, vector<1x32xf32>
    %cst_185 = arith.constant 0.000000e+00 : f32
    %419 = vector.broadcast %cst_185 : f32 to vector<1x32xf32>
    %420 = arith.subf %419, %418 : vector<1x32xf32>
    %c0_186 = arith.constant 0 : index
    %421 = arith.index_cast %c6_i32 : i32 to index
    %c0_187 = arith.constant 0 : index
    %422 = vector.load %arg9[%c0_186, %421, %c0_187] : memref<6x8x32xf32, #tpu.memory_space<vmem>>, vector<1x1x32xf32>
    %423 = vector.shape_cast %422 : vector<1x1x32xf32> to vector<1x32xf32>
    %424 = vector.shape_cast %420 : vector<1x32xf32> to vector<1x1x32xf32>
    tpu.vector_store %arg9[%c0_186, %421, %c0_187], %424 {strides = array<i32>} : memref<6x8x32xf32, #tpu.memory_space<vmem>>, vector<1x1x32xf32>,
    %c5_i32_188 = arith.constant 5 : i32
    %425 = arith.muli %408, %c5_i32_188 : i32
    %c0_i32_189 = arith.constant 0 : i32
    %426 = arith.addi %425, %c0_i32_189 : i32
    %427 = arith.index_cast %426 : i32 to index
    %428 = memref.load %arg4[%427] : memref<40xi32, #tpu.memory_space<smem>>
    %429 = arith.index_cast %428 : i32 to index
    %c0_190 = arith.constant 0 : index
    %430 = vector.load %arg6[%429, %c0_190] : memref<100x32xf32, #tpu.memory_space<vmem>>, vector<1x32xf32>
    %c1_191 = arith.constant 1 : index
    %431 = arith.index_cast %c6_i32 : i32 to index
    %c0_192 = arith.constant 0 : index
    %432 = vector.load %arg9[%c1_191, %431, %c0_192] : memref<6x8x32xf32, #tpu.memory_space<vmem>>, vector<1x1x32xf32>
    %433 = vector.shape_cast %432 : vector<1x1x32xf32> to vector<1x32xf32>
    %434 = vector.shape_cast %430 : vector<1x32xf32> to vector<1x1x32xf32>
    tpu.vector_store %arg9[%c1_191, %431, %c0_192], %434 {strides = array<i32>} : memref<6x8x32xf32, #tpu.memory_space<vmem>>, vector<1x1x32xf32>,
    %c5_i32_193 = arith.constant 5 : i32
    %435 = arith.muli %408, %c5_i32_193 : i32
    %c1_i32_194 = arith.constant 1 : i32
    %436 = arith.addi %435, %c1_i32_194 : i32
    %437 = arith.index_cast %436 : i32 to index
    %438 = memref.load %arg4[%437] : memref<40xi32, #tpu.memory_space<smem>>
    %439 = arith.index_cast %438 : i32 to index
    %c0_195 = arith.constant 0 : index
    %440 = vector.load %arg6[%439, %c0_195] : memref<100x32xf32, #tpu.memory_space<vmem>>, vector<1x32xf32>
    %c2_196 = arith.constant 2 : index
    %441 = arith.index_cast %c6_i32 : i32 to index
    %c0_197 = arith.constant 0 : index
    %442 = vector.load %arg9[%c2_196, %441, %c0_197] : memref<6x8x32xf32, #tpu.memory_space<vmem>>, vector<1x1x32xf32>
    %443 = vector.shape_cast %442 : vector<1x1x32xf32> to vector<1x32xf32>
    %444 = vector.shape_cast %440 : vector<1x32xf32> to vector<1x1x32xf32>
    tpu.vector_store %arg9[%c2_196, %441, %c0_197], %444 {strides = array<i32>} : memref<6x8x32xf32, #tpu.memory_space<vmem>>, vector<1x1x32xf32>,
    %c5_i32_198 = arith.constant 5 : i32
    %445 = arith.muli %408, %c5_i32_198 : i32
    %c2_i32_199 = arith.constant 2 : i32
    %446 = arith.addi %445, %c2_i32_199 : i32
    %447 = arith.index_cast %446 : i32 to index
    %448 = memref.load %arg4[%447] : memref<40xi32, #tpu.memory_space<smem>>
    %449 = arith.index_cast %448 : i32 to index
    %c0_200 = arith.constant 0 : index
    %450 = vector.load %arg6[%449, %c0_200] : memref<100x32xf32, #tpu.memory_space<vmem>>, vector<1x32xf32>
    %c3_201 = arith.constant 3 : index
    %451 = arith.index_cast %c6_i32 : i32 to index
    %c0_202 = arith.constant 0 : index
    %452 = vector.load %arg9[%c3_201, %451, %c0_202] : memref<6x8x32xf32, #tpu.memory_space<vmem>>, vector<1x1x32xf32>
    %453 = vector.shape_cast %452 : vector<1x1x32xf32> to vector<1x32xf32>
    %454 = vector.shape_cast %450 : vector<1x32xf32> to vector<1x1x32xf32>
    tpu.vector_store %arg9[%c3_201, %451, %c0_202], %454 {strides = array<i32>} : memref<6x8x32xf32, #tpu.memory_space<vmem>>, vector<1x1x32xf32>,
    %c5_i32_203 = arith.constant 5 : i32
    %455 = arith.muli %408, %c5_i32_203 : i32
    %c3_i32_204 = arith.constant 3 : i32
    %456 = arith.addi %455, %c3_i32_204 : i32
    %457 = arith.index_cast %456 : i32 to index
    %458 = memref.load %arg4[%457] : memref<40xi32, #tpu.memory_space<smem>>
    %459 = arith.index_cast %458 : i32 to index
    %c0_205 = arith.constant 0 : index
    %460 = vector.load %arg6[%459, %c0_205] : memref<100x32xf32, #tpu.memory_space<vmem>>, vector<1x32xf32>
    %c4_206 = arith.constant 4 : index
    %461 = arith.index_cast %c6_i32 : i32 to index
    %c0_207 = arith.constant 0 : index
    %462 = vector.load %arg9[%c4_206, %461, %c0_207] : memref<6x8x32xf32, #tpu.memory_space<vmem>>, vector<1x1x32xf32>
    %463 = vector.shape_cast %462 : vector<1x1x32xf32> to vector<1x32xf32>
    %464 = vector.shape_cast %460 : vector<1x32xf32> to vector<1x1x32xf32>
    tpu.vector_store %arg9[%c4_206, %461, %c0_207], %464 {strides = array<i32>} : memref<6x8x32xf32, #tpu.memory_space<vmem>>, vector<1x1x32xf32>,
    %c5_i32_208 = arith.constant 5 : i32
    %465 = arith.muli %408, %c5_i32_208 : i32
    %c4_i32_209 = arith.constant 4 : i32
    %466 = arith.addi %465, %c4_i32_209 : i32
    %467 = arith.index_cast %466 : i32 to index
    %468 = memref.load %arg4[%467] : memref<40xi32, #tpu.memory_space<smem>>
    %469 = arith.index_cast %468 : i32 to index
    %c0_210 = arith.constant 0 : index
    %470 = vector.load %arg6[%469, %c0_210] : memref<100x32xf32, #tpu.memory_space<vmem>>, vector<1x32xf32>
    %c5_211 = arith.constant 5 : index
    %471 = arith.index_cast %c6_i32 : i32 to index
    %c0_212 = arith.constant 0 : index
    %472 = vector.load %arg9[%c5_211, %471, %c0_212] : memref<6x8x32xf32, #tpu.memory_space<vmem>>, vector<1x1x32xf32>
    %473 = vector.shape_cast %472 : vector<1x1x32xf32> to vector<1x32xf32>
    %474 = vector.shape_cast %470 : vector<1x32xf32> to vector<1x1x32xf32>
    tpu.vector_store %arg9[%c5_211, %471, %c0_212], %474 {strides = array<i32>} : memref<6x8x32xf32, #tpu.memory_space<vmem>>, vector<1x1x32xf32>,
    %c7_i32 = arith.constant 7 : i32
    %475 = arith.addi %2, %c7_i32 : i32
    %476 = arith.index_cast %475 : i32 to index
    %477 = memref.load %arg2[%476] : memref<8xi32, #tpu.memory_space<smem>>
    %478 = arith.index_cast %475 : i32 to index
    %479 = memref.load %arg3[%478] : memref<8xi32, #tpu.memory_space<smem>>
    %480 = arith.index_cast %477 : i32 to index
    %c0_213 = arith.constant 0 : index
    %481 = vector.load %arg5[%480, %c0_213] : memref<100x32xf32, #tpu.memory_space<vmem>>, vector<1x32xf32>
    %482 = arith.index_cast %c7_i32 : i32 to index
    %c0_214 = arith.constant 0 : index
    %483 = vector.load %arg8[%482, %c0_214] : memref<8x32xf32, #tpu.memory_space<vmem>>, vector<1x32xf32>
    tpu.vector_store %arg8[%482, %c0_214], %481 {strides = array<i32>} : memref<8x32xf32, #tpu.memory_space<vmem>>, vector<1x32xf32>,
    %484 = arith.index_cast %479 : i32 to index
    %c0_215 = arith.constant 0 : index
    %485 = vector.load %arg6[%484, %c0_215] : memref<100x32xf32, #tpu.memory_space<vmem>>, vector<1x32xf32>
    %cst_216 = arith.constant 0.000000e+00 : f32
    %486 = vector.broadcast %cst_216 : f32 to vector<1x32xf32>
    %487 = arith.subf %486, %485 : vector<1x32xf32>
    %c0_217 = arith.constant 0 : index
    %488 = arith.index_cast %c7_i32 : i32 to index
    %c0_218 = arith.constant 0 : index
    %489 = vector.load %arg9[%c0_217, %488, %c0_218] : memref<6x8x32xf32, #tpu.memory_space<vmem>>, vector<1x1x32xf32>
    %490 = vector.shape_cast %489 : vector<1x1x32xf32> to vector<1x32xf32>
    %491 = vector.shape_cast %487 : vector<1x32xf32> to vector<1x1x32xf32>
    tpu.vector_store %arg9[%c0_217, %488, %c0_218], %491 {strides = array<i32>} : memref<6x8x32xf32, #tpu.memory_space<vmem>>, vector<1x1x32xf32>,
    %c5_i32_219 = arith.constant 5 : i32
    %492 = arith.muli %475, %c5_i32_219 : i32
    %c0_i32_220 = arith.constant 0 : i32
    %493 = arith.addi %492, %c0_i32_220 : i32
    %494 = arith.index_cast %493 : i32 to index
    %495 = memref.load %arg4[%494] : memref<40xi32, #tpu.memory_space<smem>>
    %496 = arith.index_cast %495 : i32 to index
    %c0_221 = arith.constant 0 : index
    %497 = vector.load %arg6[%496, %c0_221] : memref<100x32xf32, #tpu.memory_space<vmem>>, vector<1x32xf32>
    %c1_222 = arith.constant 1 : index
    %498 = arith.index_cast %c7_i32 : i32 to index
    %c0_223 = arith.constant 0 : index
    %499 = vector.load %arg9[%c1_222, %498, %c0_223] : memref<6x8x32xf32, #tpu.memory_space<vmem>>, vector<1x1x32xf32>
    %500 = vector.shape_cast %499 : vector<1x1x32xf32> to vector<1x32xf32>
    %501 = vector.shape_cast %497 : vector<1x32xf32> to vector<1x1x32xf32>
    tpu.vector_store %arg9[%c1_222, %498, %c0_223], %501 {strides = array<i32>} : memref<6x8x32xf32, #tpu.memory_space<vmem>>, vector<1x1x32xf32>,
    %c5_i32_224 = arith.constant 5 : i32
    %502 = arith.muli %475, %c5_i32_224 : i32
    %c1_i32_225 = arith.constant 1 : i32
    %503 = arith.addi %502, %c1_i32_225 : i32
    %504 = arith.index_cast %503 : i32 to index
    %505 = memref.load %arg4[%504] : memref<40xi32, #tpu.memory_space<smem>>
    %506 = arith.index_cast %505 : i32 to index
    %c0_226 = arith.constant 0 : index
    %507 = vector.load %arg6[%506, %c0_226] : memref<100x32xf32, #tpu.memory_space<vmem>>, vector<1x32xf32>
    %c2_227 = arith.constant 2 : index
    %508 = arith.index_cast %c7_i32 : i32 to index
    %c0_228 = arith.constant 0 : index
    %509 = vector.load %arg9[%c2_227, %508, %c0_228] : memref<6x8x32xf32, #tpu.memory_space<vmem>>, vector<1x1x32xf32>
    %510 = vector.shape_cast %509 : vector<1x1x32xf32> to vector<1x32xf32>
    %511 = vector.shape_cast %507 : vector<1x32xf32> to vector<1x1x32xf32>
    tpu.vector_store %arg9[%c2_227, %508, %c0_228], %511 {strides = array<i32>} : memref<6x8x32xf32, #tpu.memory_space<vmem>>, vector<1x1x32xf32>,
    %c5_i32_229 = arith.constant 5 : i32
    %512 = arith.muli %475, %c5_i32_229 : i32
    %c2_i32_230 = arith.constant 2 : i32
    %513 = arith.addi %512, %c2_i32_230 : i32
    %514 = arith.index_cast %513 : i32 to index
    %515 = memref.load %arg4[%514] : memref<40xi32, #tpu.memory_space<smem>>
    %516 = arith.index_cast %515 : i32 to index
    %c0_231 = arith.constant 0 : index
    %517 = vector.load %arg6[%516, %c0_231] : memref<100x32xf32, #tpu.memory_space<vmem>>, vector<1x32xf32>
    %c3_232 = arith.constant 3 : index
    %518 = arith.index_cast %c7_i32 : i32 to index
    %c0_233 = arith.constant 0 : index
    %519 = vector.load %arg9[%c3_232, %518, %c0_233] : memref<6x8x32xf32, #tpu.memory_space<vmem>>, vector<1x1x32xf32>
    %520 = vector.shape_cast %519 : vector<1x1x32xf32> to vector<1x32xf32>
    %521 = vector.shape_cast %517 : vector<1x32xf32> to vector<1x1x32xf32>
    tpu.vector_store %arg9[%c3_232, %518, %c0_233], %521 {strides = array<i32>} : memref<6x8x32xf32, #tpu.memory_space<vmem>>, vector<1x1x32xf32>,
    %c5_i32_234 = arith.constant 5 : i32
    %522 = arith.muli %475, %c5_i32_234 : i32
    %c3_i32_235 = arith.constant 3 : i32
    %523 = arith.addi %522, %c3_i32_235 : i32
    %524 = arith.index_cast %523 : i32 to index
    %525 = memref.load %arg4[%524] : memref<40xi32, #tpu.memory_space<smem>>
    %526 = arith.index_cast %525 : i32 to index
    %c0_236 = arith.constant 0 : index
    %527 = vector.load %arg6[%526, %c0_236] : memref<100x32xf32, #tpu.memory_space<vmem>>, vector<1x32xf32>
    %c4_237 = arith.constant 4 : index
    %528 = arith.index_cast %c7_i32 : i32 to index
    %c0_238 = arith.constant 0 : index
    %529 = vector.load %arg9[%c4_237, %528, %c0_238] : memref<6x8x32xf32, #tpu.memory_space<vmem>>, vector<1x1x32xf32>
    %530 = vector.shape_cast %529 : vector<1x1x32xf32> to vector<1x32xf32>
    %531 = vector.shape_cast %527 : vector<1x32xf32> to vector<1x1x32xf32>
    tpu.vector_store %arg9[%c4_237, %528, %c0_238], %531 {strides = array<i32>} : memref<6x8x32xf32, #tpu.memory_space<vmem>>, vector<1x1x32xf32>,
    %c5_i32_239 = arith.constant 5 : i32
    %532 = arith.muli %475, %c5_i32_239 : i32
    %c4_i32_240 = arith.constant 4 : i32
    %533 = arith.addi %532, %c4_i32_240 : i32
    %534 = arith.index_cast %533 : i32 to index
    %535 = memref.load %arg4[%534] : memref<40xi32, #tpu.memory_space<smem>>
    %536 = arith.index_cast %535 : i32 to index
    %c0_241 = arith.constant 0 : index
    %537 = vector.load %arg6[%536, %c0_241] : memref<100x32xf32, #tpu.memory_space<vmem>>, vector<1x32xf32>
    %c5_242 = arith.constant 5 : index
    %538 = arith.index_cast %c7_i32 : i32 to index
    %c0_243 = arith.constant 0 : index
    %539 = vector.load %arg9[%c5_242, %538, %c0_243] : memref<6x8x32xf32, #tpu.memory_space<vmem>>, vector<1x1x32xf32>
    %540 = vector.shape_cast %539 : vector<1x1x32xf32> to vector<1x32xf32>
    %541 = vector.shape_cast %537 : vector<1x32xf32> to vector<1x1x32xf32>
    tpu.vector_store %arg9[%c5_242, %538, %c0_243], %541 {strides = array<i32>} : memref<6x8x32xf32, #tpu.memory_space<vmem>>, vector<1x1x32xf32>,
    %c8_i32_244 = arith.constant 8 : i32
    %c0_245 = arith.constant 0 : index
    %c0_246 = arith.constant 0 : index
    %542 = vector.load %arg8[%c0_245, %c0_246] : memref<8x32xf32, #tpu.memory_space<vmem>>, vector<8x32xf32>
    %c0_247 = arith.constant 0 : index
    %c0_248 = arith.constant 0 : index
    %c0_249 = arith.constant 0 : index
    %543 = vector.load %arg9[%c0_247, %c0_248, %c0_249] : memref<6x8x32xf32, #tpu.memory_space<vmem>>, vector<6x8x32xf32>
    %544 = vector.shape_cast %542 : vector<8x32xf32> to vector<1x8x32xf32>
    %545 = vector.broadcast %544 : vector<1x8x32xf32> to vector<6x8x32xf32>
    %546 = arith.mulf %543, %545 : vector<6x8x32xf32>
    %cst_250 = arith.constant dense<0.000000e+00> : vector<6x8xf32>
    %547 = vector.multi_reduction <add>, %546, %cst_250 [2] : vector<6x8x32xf32> to vector<6x8xf32>
    %cst_251 = arith.constant -1.000000e+01 : f32
    %cst_252 = arith.constant 1.000000e+01 : f32
    %548 = vector.broadcast %cst_251 : f32 to vector<6x8xf32>
    %549 = arith.maximumf %548, %547 : vector<6x8xf32>
    %550 = vector.broadcast %cst_252 : f32 to vector<6x8xf32>
    %551 = arith.minimumf %550, %549 : vector<6x8xf32>
    %552 = math.exp %551 : vector<6x8xf32>
    %553 = math.log1p %552 : vector<6x8xf32>
    %554 = tpu.iota {dimensions = array<i32: 1>} : vector<6x8xi32>
    %555 = vector.broadcast %2 : i32 to vector<6x8xi32>
    %556 = arith.addi %555, %554 : vector<6x8xi32>
    %c8_i32_253 = arith.constant 8 : i32
    %557 = vector.broadcast %c8_i32_253 : i32 to vector<6x8xi32>
    %558 = arith.cmpi slt, %556, %557 : vector<6x8xi32>
    %cst_254 = arith.constant 0.000000e+00 : f32
    %559 = vector.broadcast %cst_254 : f32 to vector<6x8xf32>
    %560 = arith.select %558, %553, %559 : vector<6x8xi1>, vector<6x8xf32>
    %cst_255 = arith.constant dense<0.000000e+00> : vector<6xf32>
    %561 = vector.multi_reduction <add>, %560, %cst_255 [1] : vector<6x8xf32> to vector<6xf32>
    %562 = vector.shape_cast %561 : vector<6xf32> to vector<6x1xf32>
    %cst_256 = arith.constant dense<0.000000e+00> : vector<1xf32>
    %563 = vector.multi_reduction <add>, %562, %cst_256 [0] : vector<6x1xf32> to vector<1xf32>
    %564 = vector.shape_cast %563 : vector<1xf32> to vector<1x1xf32>
    %c0_257 = arith.constant 0 : index
    %c0_258 = arith.constant 0 : index
    %c0_259 = arith.constant 0 : index
    %565 = vector.load %arg7[%c0_257, %c0_258, %c0_259] : memref<1x1x1xf32, #tpu.memory_space<vmem>>, vector<1x1x1xf32>
    %566 = vector.shape_cast %564 : vector<1x1xf32> to vector<1x1x1xf32>
    %567 = arith.addf %565, %566 : vector<1x1x1xf32>
    %c0_260 = arith.constant 0 : index
    %c0_261 = arith.constant 0 : index
    %c0_262 = arith.constant 0 : index
    %568 = vector.load %arg7[%c0_260, %c0_261, %c0_262] : memref<1x1x1xf32, #tpu.memory_space<vmem>>, vector<1x1x1xf32>
    tpu.vector_store %arg7[%c0_260, %c0_261, %c0_262], %567 {strides = array<i32>} : memref<1x1x1xf32, #tpu.memory_space<vmem>>, vector<1x1x1xf32>,
    %c0_i32_263 = arith.constant 0 : i32
    %569 = arith.cmpi eq, %arg1, %c0_i32_263 : i32
    %570 = arith.extui %569 : i1 to i32
    %c0_i32_264 = arith.constant 0 : i32
    %571 = arith.cmpi ne, %570, %c0_i32_264 : i32
    scf.if %571 {
      %c0_265 = arith.constant 0 : index
      %c0_266 = arith.constant 0 : index
      %c0_267 = arith.constant 0 : index
      %572 = vector.load %arg7[%c0_265, %c0_266, %c0_267] : memref<1x1x1xf32, #tpu.memory_space<vmem>>, vector<1x1x1xf32>
      %cst_268 = arith.constant 1.250000e-01 : f32
      %573 = vector.broadcast %cst_268 : f32 to vector<1x1x1xf32>
      %574 = arith.mulf %572, %573 : vector<1x1x1xf32>
      %c0_269 = arith.constant 0 : index
      %c0_270 = arith.constant 0 : index
      %c0_271 = arith.constant 0 : index
      %575 = vector.load %arg7[%c0_269, %c0_270, %c0_271] : memref<1x1x1xf32, #tpu.memory_space<vmem>>, vector<1x1x1xf32>
      tpu.vector_store %arg7[%c0_269, %c0_270, %c0_271], %574 {strides = array<i32>} : memref<1x1x1xf32, #tpu.memory_space<vmem>>, vector<1x1x1xf32>,
    } else {
    }
    return
  }
  func.func @transform_0(%arg0: i32, %arg1: i32, %arg2: memref<8xi32, #tpu.memory_space<smem>>, %arg3: memref<8xi32, #tpu.memory_space<smem>>, %arg4: memref<40xi32, #tpu.memory_space<smem>>) -> (i32, i32) {
    %c0_i32 = arith.constant 0 : i32
    %c0_i32_0 = arith.constant 0 : i32
    %c0_i32_1 = arith.constant 0 : i32
    return %c0_i32, %c0_i32_0 : i32, i32
  }
  func.func @transform_1(%arg0: i32, %arg1: i32, %arg2: memref<8xi32, #tpu.memory_space<smem>>, %arg3: memref<8xi32, #tpu.memory_space<smem>>, %arg4: memref<40xi32, #tpu.memory_space<smem>>) -> (i32, i32) {
    %c0_i32 = arith.constant 0 : i32
    %c0_i32_0 = arith.constant 0 : i32
    %c0_i32_1 = arith.constant 0 : i32
    return %c0_i32, %c0_i32_0 : i32, i32
  }
  func.func @transform_2(%arg0: i32, %arg1: i32, %arg2: memref<8xi32, #tpu.memory_space<smem>>, %arg3: memref<8xi32, #tpu.memory_space<smem>>, %arg4: memref<40xi32, #tpu.memory_space<smem>>) -> (i32, i32, i32) {
    %c0_i32 = arith.constant 0 : i32
    %c0_i32_0 = arith.constant 0 : i32
    %c0_i32_1 = arith.constant 0 : i32
    return %arg0, %c0_i32, %c0_i32_0 : i32, i32, i32
  }
}

</mosaic_0001>

<llo_original>
// kernel: tpu_custom_call.1
$region0: #{tpu_custom_call.1}
  #allocation0 [shape = 'u32[]', space=smem, size = 0x4, offset = 0x4, fixed_abs, tag = 'smem constant byte address 0x4 - core index']
  #allocation1 [shape = 'u32[144,128]{1,0:T(1,128)}', space=vmem, size = 0x12000, scoped, tag = 'internal scratch']
  #allocation2 [shape = 'f32[8,32]{1,0:T(8,128)}', space=vmem, size = 0x1000, scoped, tag = 'scratch operand']
  #allocation3 [shape = 'f32[6,8,32]{2,1,0:T(8,128)}', space=vmem, size = 0x6000, scoped, tag = 'scratch operand']
  #allocation4 [shape = 's32[1]{0}', space=sflag, size = 0x4, scoped, tag = 'scoped memory for tpu_custom_call.1']
  #allocation5 [shape = 'u8[512]{0}', space=smem, size = 0x200, scoped, tag = 'prefetched SMEM operand 0']
  #allocation6 [shape = 'u8[512]{0}', space=smem, size = 0x200, scoped, tag = 'prefetched SMEM operand 1']
  #allocation7 [shape = 'u8[512]{0}', space=smem, size = 0x200, scoped, tag = 'prefetched SMEM operand 2']
  %s0 = inlined_call_operand.vmem [shape: s32[8], index: 0, kind: input, shape index: {}]
  %s1 = inlined_call_operand.vmem [shape: s32[8], index: 1, kind: input, shape index: {}]
  %s2 = inlined_call_operand.vmem [shape: s32[40], index: 2, kind: input, shape index: {}]
  %s3 = inlined_call_operand.vmem [shape: f32[100,32], index: 3, kind: input, shape index: {}]
  %s4 = inlined_call_operand.vmem [shape: f32[100,32], index: 4, kind: input, shape index: {}]
  %s5 = inlined_call_operand.hbm [shape: f32[1,1,1], index: 5, kind: output, shape index: {}]
  %s6 = sld [smem:[#allocation0]]
  $region26: #{tpu_custom_call.1} parent=0
    _
  %s8 = ssub.s32 1, %s6
  %s9 = scalar_select 0, %s8, %s6
  %s10 = sshll.u32 %s0, 4
  %s11 = int_to_ptr.vmem [resolvable:$true] %s10
  %13 = dma.vmem_to_smem %s11, 16, [#allocation5], [#allocation4]
  %s14 = sshll.u32 %s1, 4
  %s15 = int_to_ptr.vmem [resolvable:$true] %s14
  %17 = dma.vmem_to_smem %s15, 16, [#allocation6], [#allocation4]
  %s18 = sshll.u32 %s2, 4
  %s19 = int_to_ptr.vmem [resolvable:$true] %s18
  %21 = dma.vmem_to_smem %s19, 16, [#allocation7], [#allocation4]
  %22 = dma.done [#allocation4], 48
  %23 = sfence
  $region1: #{tpu_custom_call.1} parent=0
    #allocation8 [shape = 'u8[512]{0}', space=vmem, size = 0x400, scoped, tag = 'output window, operand 0, single buffered']
    #allocation9 [shape = 's32[1]{0}', space=sflag, size = 0x4, scoped, tag = 'scoped memory for tpu_custom_call.1']
    %24 = vsyncpa [#allocation9], 0
    // Predicated region
    $region2: #{tpu_custom_call.1} parent=1 // pred_check
      _
    $region3: #{tpu_custom_call.1} parent=1 // pred_check_branch
      %26 = sbr.rel (0) target = $region5
    $region4: #{tpu_custom_call.1} parent=1 // pred_region
      _
    $region5: #{tpu_custom_call.1} parent=1 // pred_fallthru
      _
    // Predicated region
    $region6: #{tpu_custom_call.1} parent=1 // pred_check
      _
    $region7: #{tpu_custom_call.1} parent=1 // pred_check_branch
      %28 = sbr.rel (0) target = $region9
    $region8: #{tpu_custom_call.1} parent=1 // pred_region
      _
    $region9: #{tpu_custom_call.1} parent=1 // pred_fallthru
      _
    %s29 = sadd.s32 0, 0
    %s30 = smul.u32 %s29, 8
    %p31 = scmp.eq.s32.totalorder 0, 0
    // Predicated region
    $region10: #{tpu_custom_call.1} parent=1 // pred_check
      %p32 = pneg %p31
    $region11: #{tpu_custom_call.1} parent=1 // pred_check_branch
      %34 = sbr.rel (%p32) target = $region13
    $region12: #{tpu_custom_call.1} parent=1 // pred_region
      %vm35 = vcmask 0
      %36 = vst.msk [vmem:[#allocation8] sm:$0x1] %vm35, 0.0
    $region13: #{tpu_custom_call.1} parent=1 // pred_fallthru
      _
    %s37 = sld [smem:[#allocation5 + %s30]]
    %s38 = sld [smem:[#allocation6 + %s30]]
    %s39 = scalar_lea.vmem %s3, %s37
    %v40 = vld [vmem:[%s39] sm:$0x1]
    %vm41 = vcmask 253952
    %42 = vst.msk [vmem:[#allocation2] sm:$0x1] %vm41, %v40
    %s43 = scalar_lea.vmem %s4, %s38
    %v44 = vld [vmem:[%s43] sm:$0x1]
    %v45 = vsub.f32 0.0, %v44
    %46 = vst.msk [vmem:[#allocation3] sm:$0x1] %vm41, %v45
    %s47 = smul.u32 %s29, 40
    %s48 = sld [smem:[#allocation7 + %s47]]
    %s49 = scalar_lea.vmem %s4, %s48
    %v50 = vld [vmem:[%s49] sm:$0x1]
    %s51 = scalar_lea.vmem [#allocation3], 8
    %52 = vst.msk [vmem:[%s51] sm:$0x1] %vm41, %v50
    %s53 = sadd.s32 %s47, 1
    %s54 = sld [smem:[#allocation7 + %s53]]
    %s55 = scalar_lea.vmem %s4, %s54
    %v56 = vld [vmem:[%s55] sm:$0x1]
    %s57 = scalar_lea.vmem [#allocation3], 16
    %58 = vst.msk [vmem:[%s57] sm:$0x1] %vm41, %v56
    %s59 = sadd.s32 %s47, 2
    %s60 = sld [smem:[#allocation7 + %s59]]
    %s61 = scalar_lea.vmem %s4, %s60
    %v62 = vld [vmem:[%s61] sm:$0x1]
    %s63 = scalar_lea.vmem [#allocation3], 24
    %64 = vst.msk [vmem:[%s63] sm:$0x1] %vm41, %v62
    %s65 = sadd.s32 %s47, 3
    %s66 = sld [smem:[#allocation7 + %s65]]
    %s67 = scalar_lea.vmem %s4, %s66
    %v68 = vld [vmem:[%s67] sm:$0x1]
    %s69 = scalar_lea.vmem [#allocation3], 32
    %70 = vst.msk [vmem:[%s69] sm:$0x1] %vm41, %v68
    %s71 = sadd.s32 %s47, 4
    %s72 = sld [smem:[#allocation7 + %s71]]
    %s73 = scalar_lea.vmem %s4, %s72
    %v74 = vld [vmem:[%s73] sm:$0x1]
    %s75 = scalar_lea.vmem [#allocation3], 40
    %76 = vst.msk [vmem:[%s75] sm:$0x1] %vm41, %v74
    %s77 = sadd.s32 %s30, 1
    %s78 = sld [smem:[#allocation5 + %s77]]
    %s79 = sld [smem:[#allocation6 + %s77]]
    %s80 = scalar_lea.vmem %s3, %s78
    %v81 = vld [vmem:[%s80] sm:$0x1]
    %82 = vst.msk [vmem:[#allocation2 + $0x1] sm:$0x1] %vm41, %v81
    %s83 = scalar_lea.vmem %s4, %s79
    %v84 = vld [vmem:[%s83] sm:$0x1]
    %v85 = vsub.f32 0.0, %v84
    %86 = vst.msk [vmem:[#allocation3 + $0x1] sm:$0x1] %vm41, %v85
    %s87 = smul.u32 %s77, 5
    %s88 = sld [smem:[#allocation7 + %s87]]
    %s89 = scalar_lea.vmem %s4, %s88
    %v90 = vld [vmem:[%s89] sm:$0x1]
    %91 = vst.msk [vmem:[%s51 + $0x1] sm:$0x1] %vm41, %v90
    %s92 = sadd.s32 %s87, 1
    %s93 = sld [smem:[#allocation7 + %s92]]
    %s94 = scalar_lea.vmem %s4, %s93
    %v95 = vld [vmem:[%s94] sm:$0x1]
    %96 = vst.msk [vmem:[%s57 + $0x1] sm:$0x1] %vm41, %v95
    %s97 = sadd.s32 %s87, 2
    %s98 = sld [smem:[#allocation7 + %s97]]
    %s99 = scalar_lea.vmem %s4, %s98
    %v100 = vld [vmem:[%s99] sm:$0x1]
    %101 = vst.msk [vmem:[%s63 + $0x1] sm:$0x1] %vm41, %v100
    %s102 = sadd.s32 %s87, 3
    %s103 = sld [smem:[#allocation7 + %s102]]
    %s104 = scalar_lea.vmem %s4, %s103
    %v105 = vld [vmem:[%s104] sm:$0x1]
    %106 = vst.msk [vmem:[%s69 + $0x1] sm:$0x1] %vm41, %v105
    %s107 = sadd.s32 %s87, 4
    %s108 = sld [smem:[#allocation7 + %s107]]
    %s109 = scalar_lea.vmem %s4, %s108
    %v110 = vld [vmem:[%s109] sm:$0x1]
    %111 = vst.msk [vmem:[%s75 + $0x1] sm:$0x1] %vm41, %v110
    %s112 = sadd.s32 %s30, 2
    %s113 = sld [smem:[#allocation5 + %s112]]
    %s114 = sld [smem:[#allocation6 + %s112]]
    %s115 = scalar_lea.vmem %s3, %s113
    %v116 = vld [vmem:[%s115] sm:$0x1]
    %117 = vst.msk [vmem:[#allocation2 + $0x2] sm:$0x1] %vm41, %v116
    %s118 = scalar_lea.vmem %s4, %s114
    %v119 = vld [vmem:[%s118] sm:$0x1]
    %v120 = vsub.f32 0.0, %v119
    %121 = vst.msk [vmem:[#allocation3 + $0x2] sm:$0x1] %vm41, %v120
    %s122 = smul.u32 %s112, 5
    %s123 = sld [smem:[#allocation7 + %s122]]
    %s124 = scalar_lea.vmem %s4, %s123
    %v125 = vld [vmem:[%s124] sm:$0x1]
    %126 = vst.msk [vmem:[%s51 + $0x2] sm:$0x1] %vm41, %v125
    %s127 = sadd.s32 %s122, 1
    %s128 = sld [smem:[#allocation7 + %s127]]
    %s129 = scalar_lea.vmem %s4, %s128
    %v130 = vld [vmem:[%s129] sm:$0x1]
    %131 = vst.msk [vmem:[%s57 + $0x2] sm:$0x1] %vm41, %v130
    %s132 = sadd.s32 %s122, 2
    %s133 = sld [smem:[#allocation7 + %s132]]
    %s134 = scalar_lea.vmem %s4, %s133
    %v135 = vld [vmem:[%s134] sm:$0x1]
    %136 = vst.msk [vmem:[%s63 + $0x2] sm:$0x1] %vm41, %v135
    %s137 = sadd.s32 %s122, 3
    %s138 = sld [smem:[#allocation7 + %s137]]
    %s139 = scalar_lea.vmem %s4, %s138
    %v140 = vld [vmem:[%s139] sm:$0x1]
    %141 = vst.msk [vmem:[%s69 + $0x2] sm:$0x1] %vm41, %v140
    %s142 = sadd.s32 %s122, 4
    %s143 = sld [smem:[#allocation7 + %s142]]
    %s144 = scalar_lea.vmem %s4, %s143
    %v145 = vld [vmem:[%s144] sm:$0x1]
    %146 = vst.msk [vmem:[%s75 + $0x2] sm:$0x1] %vm41, %v145
    %s147 = sadd.s32 %s30, 3
    %s148 = sld [smem:[#allocation5 + %s147]]
    %s149 = sld [smem:[#allocation6 + %s147]]
    %s150 = scalar_lea.vmem %s3, %s148
    %v151 = vld [vmem:[%s150] sm:$0x1]
    %152 = vst.msk [vmem:[#allocation2 + $0x3] sm:$0x1] %vm41, %v151
    %s153 = scalar_lea.vmem %s4, %s149
    %v154 = vld [vmem:[%s153] sm:$0x1]
    %v155 = vsub.f32 0.0, %v154
    %156 = vst.msk [vmem:[#allocation3 + $0x3] sm:$0x1] %vm41, %v155
    %s157 = smul.u32 %s147, 5
    %s158 = sld [smem:[#allocation7 + %s157]]
    %s159 = scalar_lea.vmem %s4, %s158
    %v160 = vld [vmem:[%s159] sm:$0x1]
    %161 = vst.msk [vmem:[%s51 + $0x3] sm:$0x1] %vm41, %v160
    %s162 = sadd.s32 %s157, 1
    %s163 = sld [smem:[#allocation7 + %s162]]
    %s164 = scalar_lea.vmem %s4, %s163
    %v165 = vld [vmem:[%s164] sm:$0x1]
    %166 = vst.msk [vmem:[%s57 + $0x3] sm:$0x1] %vm41, %v165
    %s167 = sadd.s32 %s157, 2
    %s168 = sld [smem:[#allocation7 + %s167]]
    %s169 = scalar_lea.vmem %s4, %s168
    %v170 = vld [vmem:[%s169] sm:$0x1]
    %171 = vst.msk [vmem:[%s63 + $0x3] sm:$0x1] %vm41, %v170
    %s172 = sadd.s32 %s157, 3
    %s173 = sld [smem:[#allocation7 + %s172]]
    %s174 = scalar_lea.vmem %s4, %s173
    %v175 = vld [vmem:[%s174] sm:$0x1]
    %176 = vst.msk [vmem:[%s69 + $0x3] sm:$0x1] %vm41, %v175
    %s177 = sadd.s32 %s157, 4
    %s178 = sld [smem:[#allocation7 + %s177]]
    %s179 = scalar_lea.vmem %s4, %s178
    %v180 = vld [vmem:[%s179] sm:$0x1]
    %181 = vst.msk [vmem:[%s75 + $0x3] sm:$0x1] %vm41, %v180
    %s182 = sadd.s32 %s30, 4
    %s183 = sld [smem:[#allocation5 + %s182]]
    %s184 = sld [smem:[#allocation6 + %s182]]
    %s185 = scalar_lea.vmem %s3, %s183
    %v186 = vld [vmem:[%s185] sm:$0x1]
    %187 = vst.msk [vmem:[#allocation2 + $0x4] sm:$0x1] %vm41, %v186
    %s188 = scalar_lea.vmem %s4, %s184
    %v189 = vld [vmem:[%s188] sm:$0x1]
    %v190 = vsub.f32 0.0, %v189
    %191 = vst.msk [vmem:[#allocation3 + $0x4] sm:$0x1] %vm41, %v190
    %s192 = smul.u32 %s182, 5
    %s193 = sld [smem:[#allocation7 + %s192]]
    %s194 = scalar_lea.vmem %s4, %s193
    %v195 = vld [vmem:[%s194] sm:$0x1]
    %196 = vst.msk [vmem:[%s51 + $0x4] sm:$0x1] %vm41, %v195
    %s197 = sadd.s32 %s192, 1
    %s198 = sld [smem:[#allocation7 + %s197]]
    %s199 = scalar_lea.vmem %s4, %s198
    %v200 = vld [vmem:[%s199] sm:$0x1]
    %201 = vst.msk [vmem:[%s57 + $0x4] sm:$0x1] %vm41, %v200
    %s202 = sadd.s32 %s192, 2
    %s203 = sld [smem:[#allocation7 + %s202]]
    %s204 = scalar_lea.vmem %s4, %s203
    %v205 = vld [vmem:[%s204] sm:$0x1]
    %206 = vst.msk [vmem:[%s63 + $0x4] sm:$0x1] %vm41, %v205
    %s207 = sadd.s32 %s192, 3
    %s208 = sld [smem:[#allocation7 + %s207]]
    %s209 = scalar_lea.vmem %s4, %s208
    %v210 = vld [vmem:[%s209] sm:$0x1]
    %211 = vst.msk [vmem:[%s69 + $0x4] sm:$0x1] %vm41, %v210
    %s212 = sadd.s32 %s192, 4
    %s213 = sld [smem:[#allocation7 + %s212]]
    %s214 = scalar_lea.vmem %s4, %s213
    %v215 = vld [vmem:[%s214] sm:$0x1]
    %216 = vst.msk [vmem:[%s75 + $0x4] sm:$0x1] %vm41, %v215
    %s217 = sadd.s32 %s30, 5
    %s218 = sld [smem:[#allocation5 + %s217]]
    %s219 = sld [smem:[#allocation6 + %s217]]
    %s220 = scalar_lea.vmem %s3, %s218
    %v221 = vld [vmem:[%s220] sm:$0x1]
    %222 = vst.msk [vmem:[#allocation2 + $0x5] sm:$0x1] %vm41, %v221
    %s223 = scalar_lea.vmem %s4, %s219
    %v224 = vld [vmem:[%s223] sm:$0x1]
    %v225 = vsub.f32 0.0, %v224
    %226 = vst.msk [vmem:[#allocation3 + $0x5] sm:$0x1] %vm41, %v225
    %s227 = smul.u32 %s217, 5
    %s228 = sld [smem:[#allocation7 + %s227]]
    %s229 = scalar_lea.vmem %s4, %s228
    %v230 = vld [vmem:[%s229] sm:$0x1]
    %231 = vst.msk [vmem:[%s51 + $0x5] sm:$0x1] %vm41, %v230
    %s232 = sadd.s32 %s227, 1
    %s233 = sld [smem:[#allocation7 + %s232]]
    %s234 = scalar_lea.vmem %s4, %s233
    %v235 = vld [vmem:[%s234] sm:$0x1]
    %236 = vst.msk [vmem:[%s57 + $0x5] sm:$0x1] %vm41, %v235
    %s237 = sadd.s32 %s227, 2
    %s238 = sld [smem:[#allocation7 + %s237]]
    %s239 = scalar_lea.vmem %s4, %s238
    %v240 = vld [vmem:[%s239] sm:$0x1]
    %241 = vst.msk [vmem:[%s63 + $0x5] sm:$0x1] %vm41, %v240
    %s242 = sadd.s32 %s227, 3
    %s243 = sld [smem:[#allocation7 + %s242]]
    %s244 = scalar_lea.vmem %s4, %s243
    %v245 = vld [vmem:[%s244] sm:$0x1]
    %246 = vst.msk [vmem:[%s69 + $0x5] sm:$0x1] %vm41, %v245
    %s247 = sadd.s32 %s227, 4
    %s248 = sld [smem:[#allocation7 + %s247]]
    %s249 = scalar_lea.vmem %s4, %s248
    %v250 = vld [vmem:[%s249] sm:$0x1]
    %251 = vst.msk [vmem:[%s75 + $0x5] sm:$0x1] %vm41, %v250
    %s252 = sadd.s32 %s30, 6
    %s253 = sld [smem:[#allocation5 + %s252]]
    %s254 = sld [smem:[#allocation6 + %s252]]
    %s255 = scalar_lea.vmem %s3, %s253
    %v256 = vld [vmem:[%s255] sm:$0x1]
    %257 = vst.msk [vmem:[#allocation2 + $0x6] sm:$0x1] %vm41, %v256
    %s258 = scalar_lea.vmem %s4, %s254
    %v259 = vld [vmem:[%s258] sm:$0x1]
    %v260 = vsub.f32 0.0, %v259
    %261 = vst.msk [vmem:[#allocation3 + $0x6] sm:$0x1] %vm41, %v260
    %s262 = smul.u32 %s252, 5
    %s263 = sld [smem:[#allocation7 + %s262]]
    %s264 = scalar_lea.vmem %s4, %s263
    %v265 = vld [vmem:[%s264] sm:$0x1]
    %266 = vst.msk [vmem:[%s51 + $0x6] sm:$0x1] %vm41, %v265
    %s267 = sadd.s32 %s262, 1
    %s268 = sld [smem:[#allocation7 + %s267]]
    %s269 = scalar_lea.vmem %s4, %s268
    %v270 = vld [vmem:[%s269] sm:$0x1]
    %271 = vst.msk [vmem:[%s57 + $0x6] sm:$0x1] %vm41, %v270
    %s272 = sadd.s32 %s262, 2
    %s273 = sld [smem:[#allocation7 + %s272]]
    %s274 = scalar_lea.vmem %s4, %s273
    %v275 = vld [vmem:[%s274] sm:$0x1]
    %276 = vst.msk [vmem:[%s63 + $0x6] sm:$0x1] %vm41, %v275
    %s277 = sadd.s32 %s262, 3
    %s278 = sld [smem:[#allocation7 + %s277]]
    %s279 = scalar_lea.vmem %s4, %s278
    %v280 = vld [vmem:[%s279] sm:$0x1]
    %281 = vst.msk [vmem:[%s69 + $0x6] sm:$0x1] %vm41, %v280
    %s282 = sadd.s32 %s262, 4
    %s283 = sld [smem:[#allocation7 + %s282]]
    %s284 = scalar_lea.vmem %s4, %s283
    %v285 = vld [vmem:[%s284] sm:$0x1]
    %286 = vst.msk [vmem:[%s75 + $0x6] sm:$0x1] %vm41, %v285
    %s287 = sadd.s32 %s30, 7
    %s288 = sld [smem:[#allocation5 + %s287]]
    %s289 = sld [smem:[#allocation6 + %s287]]
    %s290 = scalar_lea.vmem %s3, %s288
    %v291 = vld [vmem:[%s290] sm:$0x1]
    %292 = vst.msk [vmem:[#allocation2 + $0x7] sm:$0x1] %vm41, %v291
    %s293 = scalar_lea.vmem %s4, %s289
    %v294 = vld [vmem:[%s293] sm:$0x1]
    %v295 = vsub.f32 0.0, %v294
    %296 = vst.msk [vmem:[#allocation3 + $0x7] sm:$0x1] %vm41, %v295
    %s297 = smul.u32 %s287, 5
    %s298 = sld [smem:[#allocation7 + %s297]]
    %s299 = scalar_lea.vmem %s4, %s298
    %v300 = vld [vmem:[%s299] sm:$0x1]
    %301 = vst.msk [vmem:[%s51 + $0x7] sm:$0x1] %vm41, %v300
    %s302 = sadd.s32 %s297, 1
    %s303 = sld [smem:[#allocation7 + %s302]]
    %s304 = scalar_lea.vmem %s4, %s303
    %v305 = vld [vmem:[%s304] sm:$0x1]
    %306 = vst.msk [vmem:[%s57 + $0x7] sm:$0x1] %vm41, %v305
    %s307 = sadd.s32 %s297, 2
    %s308 = sld [smem:[#allocation7 + %s307]]
    %s309 = scalar_lea.vmem %s4, %s308
    %v310 = vld [vmem:[%s309] sm:$0x1]
    %311 = vst.msk [vmem:[%s63 + $0x7] sm:$0x1] %vm41, %v310
    %s312 = sadd.s32 %s297, 3
    %s313 = sld [smem:[#allocation7 + %s312]]
    %s314 = scalar_lea.vmem %s4, %s313
    %v315 = vld [vmem:[%s314] sm:$0x1]
    %316 = vst.msk [vmem:[%s69 + $0x7] sm:$0x1] %vm41, %v315
    %s317 = sadd.s32 %s297, 4
    %s318 = sld [smem:[#allocation7 + %s317]]
    %s319 = scalar_lea.vmem %s4, %s318
    %v320 = vld [vmem:[%s319] sm:$0x1]
    %321 = vst.msk [vmem:[%s75 + $0x7] sm:$0x1] %vm41, %v320
    %v322 = vld [vmem:[#allocation2] sm:$0xff]
    %v323 = vld [vmem:[#allocation3] sm:$0xff]
    %v324 = vld [vmem:[#allocation3 + $0x8] sm:$0xff]
    %v325 = vld [vmem:[#allocation3 + $0x10] sm:$0xff]
    %v326 = vld [vmem:[#allocation3 + $0x18] sm:$0xff]
    %v327 = vld [vmem:[#allocation3 + $0x20] sm:$0xff]
    %v328 = vld [vmem:[#allocation3 + $0x28] sm:$0xff]
    %v329 = vmul.f32 %v323, %v322
    %v330 = vmul.f32 %v324, %v322
    %v331 = vmul.f32 %v325, %v322
    %v332 = vmul.f32 %v326, %v322
    %v333 = vmul.f32 %v327, %v322
    %v334 = vmul.f32 %v328, %v322
    %vm335 = vcmask 261120
    %v336 = vsel %vm335, %v329, 0.0
    %337 = vadd.xlane.f32.xlu0 %v336
    %v338 = vpop.xlane.xlu0 %337
    %v339 = vsel %vm335, %v330, 0.0
    %340 = vadd.xlane.f32.xlu0 %v339
    %v341 = vpop.xlane.xlu0 %340
    %v342 = vsel %vm335, %v331, 0.0
    %343 = vadd.xlane.f32.xlu0 %v342
    %v344 = vpop.xlane.xlu0 %343
    %v345 = vsel %vm335, %v332, 0.0
    %346 = vadd.xlane.f32.xlu0 %v345
    %v347 = vpop.xlane.xlu0 %346
    %v348 = vsel %vm335, %v333, 0.0
    %349 = vadd.xlane.f32.xlu0 %v348
    %v350 = vpop.xlane.xlu0 %349
    %v351 = vsel %vm335, %v334, 0.0
    %352 = vadd.xlane.f32.xlu0 %v351
    %v353 = vpop.xlane.xlu0 %352
    %v354 = vmax.f32 %v338, -10.0
    %v355 = vmax.f32 %v341, -10.0
    %v356 = vmax.f32 %v344, -10.0
    %v357 = vmax.f32 %v347, -10.0
    %v358 = vmax.f32 %v350, -10.0
    %v359 = vmax.f32 %v353, -10.0
    %v360 = vmin.f32 %v354, 10.0
    %v361 = vmin.f32 %v355, 10.0
    %v362 = vmin.f32 %v356, 10.0
    %v363 = vmin.f32 %v357, 10.0
    %v364 = vmin.f32 %v358, 10.0
    %v365 = vmin.f32 %v359, 10.0
    %v366 = vmul.f32 %v360, 1.442695
    %v367 = vpow.pop %v366
    %v368 = vmul.f32 %v361, 1.442695
    %v369 = vpow.pop %v368
    %v370 = vmul.f32 %v362, 1.442695
    %v371 = vpow.pop %v370
    %v372 = vmul.f32 %v363, 1.442695
    %v373 = vpow.pop %v372
    %v374 = vmul.f32 %v364, 1.442695
    %v375 = vpow.pop %v374
    %v376 = vmul.f32 %v365, 1.442695
    %v377 = vpow.pop %v376
    %v378 = vadd.f32 %v367, 1.0
    %v379 = vlog2.pop %v378
    %v380 = vmul.f32 %v379, 0.6931472
    %v381 = vmul.f32 -0.5, %v367
    %v382 = vadd.f32 %v381, 1.0
    %v383 = vmul.f32 %v382, %v367
    %v384 = vand.u32 2147483647, %v367
    %vm385 = vcmp.lt.f32.partialorder %v384, 0.0004427343
    %v386 = vsel %vm385, %v383, %v380
    %v387 = vadd.f32 %v369, 1.0
    %v388 = vlog2.pop %v387
    %v389 = vmul.f32 %v388, 0.6931472
    %v390 = vmul.f32 -0.5, %v369
    %v391 = vadd.f32 %v390, 1.0
    %v392 = vmul.f32 %v391, %v369
    %v393 = vand.u32 2147483647, %v369
    %vm394 = vcmp.lt.f32.partialorder %v393, 0.0004427343
    %v395 = vsel %vm394, %v392, %v389
    %v396 = vadd.f32 %v371, 1.0
    %v397 = vlog2.pop %v396
    %v398 = vmul.f32 %v397, 0.6931472
    %v399 = vmul.f32 -0.5, %v371
    %v400 = vadd.f32 %v399, 1.0
    %v401 = vmul.f32 %v400, %v371
    %v402 = vand.u32 2147483647, %v371
    %vm403 = vcmp.lt.f32.partialorder %v402, 0.0004427343
    %v404 = vsel %vm403, %v401, %v398
    %v405 = vadd.f32 %v373, 1.0
    %v406 = vlog2.pop %v405
    %v407 = vmul.f32 %v406, 0.6931472
    %v408 = vmul.f32 -0.5, %v373
    %v409 = vadd.f32 %v408, 1.0
    %v410 = vmul.f32 %v409, %v373
    %v411 = vand.u32 2147483647, %v373
    %vm412 = vcmp.lt.f32.partialorder %v411, 0.0004427343
    %v413 = vsel %vm412, %v410, %v407
    %v414 = vadd.f32 %v375, 1.0
    %v415 = vlog2.pop %v414
    %v416 = vmul.f32 %v415, 0.6931472
    %v417 = vmul.f32 -0.5, %v375
    %v418 = vadd.f32 %v417, 1.0
    %v419 = vmul.f32 %v418, %v375
    %v420 = vand.u32 2147483647, %v375
    %vm421 = vcmp.lt.f32.partialorder %v420, 0.0004427343
    %v422 = vsel %vm421, %v419, %v416
    %v423 = vadd.f32 %v377, 1.0
    %v424 = vlog2.pop %v423
    %v425 = vmul.f32 %v424, 0.6931472
    %v426 = vmul.f32 -0.5, %v377
    %v427 = vadd.f32 %v426, 1.0
    %v428 = vmul.f32 %v427, %v377
    %v429 = vand.u32 2147483647, %v377
    %vm430 = vcmp.lt.f32.partialorder %v429, 0.0004427343
    %v431 = vsel %vm430, %v428, %v425
    %v432 = vlaneseq
    %v433 = vand.u32 %v432, 127
    %v434 = vstv %s30
    %v435 = vadd.s32 %v434, %v433
    %vm436 = vcmp.lt.s32.totalorder %v435, 8
    %v443 = vlaneseq
    %v444 = vshrl.u32 %v443, 7
    %v445 = vsub.s32 %v433, %v444
    %v446 = vrot.slane %v386, %v445
    %v447 = vlaneseq
    %v448 = vshrl.u32 %v447, 7
    %v449 = vsub.s32 %v433, %v448
    %v450 = vrot.slane %v395, %v449
    %v451 = vlaneseq
    %v452 = vshrl.u32 %v451, 7
    %v453 = vsub.s32 %v433, %v452
    %v454 = vrot.slane %v404, %v453
    %v455 = vlaneseq
    %v456 = vshrl.u32 %v455, 7
    %v457 = vsub.s32 %v433, %v456
    %v458 = vrot.slane %v413, %v457
    %v459 = vlaneseq
    %v460 = vshrl.u32 %v459, 7
    %v461 = vsub.s32 %v433, %v460
    %v462 = vrot.slane %v422, %v461
    %v463 = vlaneseq
    %v464 = vshrl.u32 %v463, 7
    %v465 = vsub.s32 %v433, %v464
    %v466 = vrot.slane %v431, %v465
    %vm467 = vcmask 1041409
    %v468 = vsel %vm467, %v450, %v446
    %vm469 = vcmask 1042434
    %v470 = vsel %vm469, %v454, %v468
    %vm471 = vcmask 1043459
    %v472 = vsel %vm471, %v458, %v470
    %vm473 = vcmask 1044484
    %v474 = vsel %vm473, %v462, %v472
    %vm475 = vcmask 1045509
    %v476 = vsel %vm475, %v466, %v474
    %v478 = vsel %vm436, %v476, 0.0
    %vm479 = vcmask 62464
    %v480 = vsel %vm479, %v478, 0.0
    %481 = vadd.xlane.f32.xlu0 %v480
    %v482 = vpop.xlane.xlu0 %481
    %vm483 = vcmask 1045504
    %v484 = vsel %vm483, %v482, 0.0
    %v485 = vrot.slane %v484, 4
    %v486 = vadd.f32 %v484, %v485
    %v487 = vrot.slane %v486, 2
    %v488 = vadd.f32 %v486, %v487
    %v489 = vrot.slane %v488, 1
    %v490 = vadd.f32 %v488, %v489
    %v491 = vld [vmem:[#allocation8] sm:$0x1]
    %v492 = vadd.f32 %v491, %v490
    %vm493 = vcmask 0
    %494 = vst.msk [vmem:[#allocation8] sm:$0x1] %vm493, %v492
    // Predicated region
    $region14: #{tpu_custom_call.1} parent=1 // pred_check
      %p495 = pneg %p31
    $region15: #{tpu_custom_call.1} parent=1 // pred_check_branch
      %497 = sbr.rel (%p495) target = $region17
    $region16: #{tpu_custom_call.1} parent=1 // pred_region
      %v498 = vld [vmem:[#allocation8] sm:$0x1]
      %v499 = vmul.f32 %v498, 0.125
      %500 = vst.msk [vmem:[#allocation8] sm:$0x1] %vm493, %v499
    $region17: #{tpu_custom_call.1} parent=1 // pred_fallthru
      _
    // Predicated region
    $region18: #{tpu_custom_call.1} parent=1 // pred_check
      _
    $region19: #{tpu_custom_call.1} parent=1 // pred_check_branch
      %502 = sbr.rel (0) target = $region21
    $region20: #{tpu_custom_call.1} parent=1 // pred_region
      %s504 = ssub.s32 16, 16
      %505 = vsyncadd [#allocation9], %s504
      %s507 = sshll.u32 [#allocation8], 4
      %s508 = int_to_ptr.vmem [resolvable:$true] %s507
      %510 = dma.vmem_to_hbm [thread:$0]  %s508, 16, %s5, [#allocation9]
    $region21: #{tpu_custom_call.1} parent=1 // pred_fallthru
      _
    // Predicated region
    $region22: #{tpu_custom_call.1} parent=1 // pred_check
      _
    $region23: #{tpu_custom_call.1} parent=1 // pred_check_branch
      %512 = sbr.rel (0) target = $region25
    $region24: #{tpu_custom_call.1} parent=1 // pred_region
      %513 = dma.done [#allocation9], 16
    $region25: #{tpu_custom_call.1} parent=1 // pred_fallthru
      _
    %514 = vsyncpa [#allocation9], 1

</llo_original>
